<compile_context>
chip_gen: v7x
topology: tpu7x:2x2x1
jax: 0.10.0
libtpu: 0.0.40
codegen_flags: <defaults>
</compile_context>

<pallas_src>
import functools

import jax
import jax.numpy as jnp
from jax.experimental import pallas as pl
from jax.experimental.pallas import tpu as pltpu

D_IN = 28 * 28        # 784 (unpadded; MXU rounds K to 128-chunks internally)
D_HID = 512
D_OUT = 10
D_OUT_PAD = 128       # lane-dense output slab (unmasked full-lane stores)
SUB_ROWS = 256        # in-kernel batch sub-tile size


def _round_up(x, m):
    return (x + m - 1) // m * m


def _make_mlp_kernel(tb):
    """Fused 3-layer MLP over one (tb, 784) f32 batch tile, sub-tiled in rows."""
    bounds = []
    start = 0
    while start < tb:
        size = min(SUB_ROWS, tb - start)
        bounds.append((start, size))
        start += size

    def mlp_kernel(x_ref, w1_ref, b1_ref, w2_ref, b2_ref, w3_ref, b3_ref, o_ref):
        # Weights/biases are VMEM-resident across the whole batch grid.
        w1 = w1_ref[...]
        w2 = w2_ref[...]
        w3 = w3_ref[...]
        b1 = b1_ref[...]
        b2 = b2_ref[...]
        b3 = b3_ref[...]
        # Static (fully unrolled) loop over independent row sub-tiles: the VPU
        # epilogue (bias+ReLU+bf16 cast) of one sub-tile hides under the next
        # sub-tile's MXU stream; live f32 intermediates stay small.
        for s, n in bounds:
            xs = x_ref[s:s + n, :].astype(jnp.bfloat16)          # f32->bf16 in-kernel
            h1 = jnp.dot(xs, w1, preferred_element_type=jnp.float32) + b1
            h1 = jnp.maximum(h1, 0.0).astype(jnp.bfloat16)
            h2 = jnp.dot(h1, w2, preferred_element_type=jnp.float32) + b2
            h2 = jnp.maximum(h2, 0.0).astype(jnp.bfloat16)
            out = jnp.dot(h2, w3, preferred_element_type=jnp.float32) + b3
            o_ref[s:s + n, :] = out.astype(o_ref.dtype)          # (n, 128) bf16

    return mlp_kernel


@functools.partial(jax.jit, static_argnames=("block_b",))
def neural_network_forward(x_nchw, params, block_b=2048):
    """x_nchw: (B, 1, 28, 28) float32. Returns (B, 10) float32 logits."""
    w1, b1, w2, b2, w3, b3 = params
    B = x_nchw.shape[0]

    # nn.Flatten(): metadata-only reshape of the contiguous input; kept f32 —
    # no wrapper-side cast/pad HBM round-trip.
    x = x_nchw.reshape(B, D_IN)

    rows = B
    if rows < 8:                                  # sublane minimum for the tile
        x = jnp.pad(x, ((0, 8 - rows), (0, 0)))
        rows = 8

    if rows > block_b:
        tb = block_b
    else:
        # >= 2 grid steps (whenever rows > 8) so v7x's second TensorCore gets work.
        tb = max(8, _round_up(pl.cdiv(rows, 2), 8))
    grid_b = pl.cdiv(rows, tb)                    # ragged last tile -> masked by Pallas

    # bf16 weights (MXU operands), f32 biases added on the f32 accumulator.
    # Only the last layer's N is padded 10 -> 128 for lane-dense stores.
    w1b = w1.astype(jnp.bfloat16)
    w2b = w2.astype(jnp.bfloat16)
    w3b = jnp.pad(w3.astype(jnp.bfloat16), ((0, 0), (0, D_OUT_PAD - D_OUT)))
    b1f = b1.astype(jnp.float32)
    b2f = b2.astype(jnp.float32)
    b3f = jnp.pad(b3.astype(jnp.float32), ((0, 0), (0, D_OUT_PAD - D_OUT)))

    # Constant index_map -> fetched once, VMEM-resident over the whole grid.
    resident = lambda shape: pl.BlockSpec(shape, lambda i: (0, 0))

    out = pl.pallas_call(
        _make_mlp_kernel(tb),
        out_shape=jax.ShapeDtypeStruct((rows, D_OUT_PAD), jnp.bfloat16),
        grid=(grid_b,),
        in_specs=[
            pl.BlockSpec((tb, D_IN), lambda i: (i, 0)),   # streamed raw-f32 batch tiles
            resident(w1b.shape), resident(b1f.shape),
            resident(w2b.shape), resident(b2f.shape),
            resident(w3b.shape), resident(b3f.shape),
        ],
        out_specs=pl.BlockSpec((tb, D_OUT_PAD), lambda i: (i, 0)),
        compiler_params=pltpu.CompilerParams(
            dimension_semantics=("parallel",),            # shard batch tiles over v7x's 2 TCs
            vmem_limit_bytes=64 * 1024 * 1024,            # TB=2048 exceeds v5e's 16 MiB default
        ),
    )(x, w1b, b1f, w2b, b2f, w3b, b3f)

    # Module semantics: (B, 10) logits (tiny slice + upcast; negligible traffic).
    return out[:B, :D_OUT].astype(jnp.float32)


def init_params(key):
    """Deterministic init matching nn.Linear shapes.
    Weights stored transposed vs PyTorch: (in_features, out_features)."""
    dims = [(D_IN, D_HID), (D_HID, D_HID), (D_HID, D_OUT)]
    params = []
    for i, (fan_in, fan_out) in enumerate(dims):
        kw, kb, key = jax.random.split(jax.random.fold_in(key, i), 3)
        bound = 1.0 / jnp.sqrt(fan_in)
        w = jax.random.uniform(kw, (fan_in, fan_out), jnp.float32, -bound, bound)
        b = jax.random.uniform(kb, (1, fan_out), jnp.float32, -bound, bound)
        params += [w, b]
    return tuple(params)


def reference_forward(x_nchw, params):
    """Pure-JAX reference with the same bf16-operand / f32-accumulate recipe."""
    w1, b1, w2, b2, w3, b3 = params
    x = x_nchw.reshape(x_nchw.shape[0], -1).astype(jnp.bfloat16)
    h1 = jnp.dot(x, w1.astype(jnp.bfloat16), preferred_element_type=jnp.float32) + b1
    h1 = jnp.maximum(h1, 0.0).astype(jnp.bfloat16)
    h2 = jnp.dot(h1, w2.astype(jnp.bfloat16), preferred_element_type=jnp.float32) + b2
    h2 = jnp.maximum(h2, 0.0).astype(jnp.bfloat16)
    out = jnp.dot(h2, w3.astype(jnp.bfloat16), preferred_element_type=jnp.float32) + b3
    return out.astype(jnp.bfloat16).astype(jnp.float32)   # match kernel's bf16 store


if __name__ == "__main__":
    key = jax.random.PRNGKey(0)
    k_x, k_p = jax.random.split(key)
    params = init_params(k_p)

    # Exercise both the single-tile (grid=1) and streamed/sharded (grid=2) paths.
    for B in (8, 32):
        x = jax.random.normal(jax.random.fold_in(k_x, B), (B, 1, 28, 28),
                              dtype=jnp.float32)  # NCHW, as in PyTorch
        out = jax.block_until_ready(neural_network_forward(x, params))
        ref = reference_forward(x, params)
        assert out.shape == (B, D_OUT), out.shape
        assert jnp.allclose(out, ref, atol=2e-2, rtol=2e-2), f"mismatch vs reference (B={B})"

    print("KERNEL_OK")
</pallas_src>

<mosaic_0001>
module attributes {stable_mosaic.version = 11 : i64} {
  func.func @mlp_kernel(%arg0: i32, %arg1: memref<8x784xf32, #tpu.memory_space<vmem>>, %arg2: memref<784x512xbf16, #tpu.memory_space<vmem>>, %arg3: memref<1x512xf32, #tpu.memory_space<vmem>>, %arg4: memref<512x512xbf16, #tpu.memory_space<vmem>>, %arg5: memref<1x512xf32, #tpu.memory_space<vmem>>, %arg6: memref<512x128xbf16, #tpu.memory_space<vmem>>, %arg7: memref<1x128xf32, #tpu.memory_space<vmem>>, %arg8: memref<8x128xbf16, #tpu.memory_space<vmem>>) attributes {dimension_semantics = [#tpu.dimension_semantics<parallel>], iteration_bounds = array<i64: 1>, scalar_prefetch = 0 : i64, scratch_operands = 0 : i64, tpu.core_type = #tpu.core_type<tc>, window_params = [{transform_indices = @transform_0, window_bounds = array<i64: 8, 784>}, {pipeline_mode = #tpu.pipeline_mode<synchronous>, transform_indices = @transform_1, window_bounds = array<i64: 784, 512>}, {pipeline_mode = #tpu.pipeline_mode<synchronous>, transform_indices = @transform_2, window_bounds = array<i64: 1, 512>}, {pipeline_mode = #tpu.pipeline_mode<synchronous>, transform_indices = @transform_3, window_bounds = array<i64: 512, 512>}, {pipeline_mode = #tpu.pipeline_mode<synchronous>, transform_indices = @transform_4, window_bounds = array<i64: 1, 512>}, {pipeline_mode = #tpu.pipeline_mode<synchronous>, transform_indices = @transform_5, window_bounds = array<i64: 512, 128>}, {pipeline_mode = #tpu.pipeline_mode<synchronous>, transform_indices = @transform_6, window_bounds = array<i64: 1, 128>}, {transform_indices = @transform_7, window_bounds = array<i64: 8, 128>}]} {
    %c0 = arith.constant 0 : index
    %c0_0 = arith.constant 0 : index
    %0 = vector.load %arg2[%c0, %c0_0] : memref<784x512xbf16, #tpu.memory_space<vmem>>, vector<784x512xbf16>
    %c0_1 = arith.constant 0 : index
    %c0_2 = arith.constant 0 : index
    %1 = vector.load %arg4[%c0_1, %c0_2] : memref<512x512xbf16, #tpu.memory_space<vmem>>, vector<512x512xbf16>
    %c0_3 = arith.constant 0 : index
    %c0_4 = arith.constant 0 : index
    %2 = vector.load %arg6[%c0_3, %c0_4] : memref<512x128xbf16, #tpu.memory_space<vmem>>, vector<512x128xbf16>
    %c0_5 = arith.constant 0 : index
    %c0_6 = arith.constant 0 : index
    %3 = vector.load %arg3[%c0_5, %c0_6] : memref<1x512xf32, #tpu.memory_space<vmem>>, vector<1x512xf32>
    %c0_7 = arith.constant 0 : index
    %c0_8 = arith.constant 0 : index
    %4 = vector.load %arg5[%c0_7, %c0_8] : memref<1x512xf32, #tpu.memory_space<vmem>>, vector<1x512xf32>
    %c0_9 = arith.constant 0 : index
    %c0_10 = arith.constant 0 : index
    %5 = vector.load %arg7[%c0_9, %c0_10] : memref<1x128xf32, #tpu.memory_space<vmem>>, vector<1x128xf32>
    %c0_11 = arith.constant 0 : index
    %c0_12 = arith.constant 0 : index
    %6 = vector.load %arg1[%c0_11, %c0_12] : memref<8x784xf32, #tpu.memory_space<vmem>>, vector<8x784xf32>
    %7 = arith.truncf %6 : vector<8x784xf32> to vector<8x784xbf16>
    %cst = arith.constant dense<0.000000e+00> : vector<8x512xf32>
    %8 = tpu.matmul %7, %0, %cst {dimension_numbers = #tpu.dot_dimension_numbers<[1], [0], [0], [1], [0, 0, 1, 1], [], []>} : vector<8x784xbf16>, vector<784x512xbf16>, vector<8x512xf32> -> vector<8x512xf32>
    %9 = vector.broadcast %3 : vector<1x512xf32> to vector<8x512xf32>
    %10 = arith.addf %8, %9 : vector<8x512xf32>
    %cst_13 = arith.constant 0.000000e+00 : f32
    %11 = vector.broadcast %cst_13 : f32 to vector<8x512xf32>
    %12 = arith.maximumf %10, %11 : vector<8x512xf32>
    %13 = arith.truncf %12 : vector<8x512xf32> to vector<8x512xbf16>
    %cst_14 = arith.constant dense<0.000000e+00> : vector<8x512xf32>
    %14 = tpu.matmul %13, %1, %cst_14 {dimension_numbers = #tpu.dot_dimension_numbers<[1], [0], [0], [1], [0, 0, 1, 1], [], []>} : vector<8x512xbf16>, vector<512x512xbf16>, vector<8x512xf32> -> vector<8x512xf32>
    %15 = vector.broadcast %4 : vector<1x512xf32> to vector<8x512xf32>
    %16 = arith.addf %14, %15 : vector<8x512xf32>
    %cst_15 = arith.constant 0.000000e+00 : f32
    %17 = vector.broadcast %cst_15 : f32 to vector<8x512xf32>
    %18 = arith.maximumf %16, %17 : vector<8x512xf32>
    %19 = arith.truncf %18 : vector<8x512xf32> to vector<8x512xbf16>
    %cst_16 = arith.constant dense<0.000000e+00> : vector<8x128xf32>
    %20 = tpu.matmul %19, %2, %cst_16 {dimension_numbers = #tpu.dot_dimension_numbers<[1], [0], [0], [1], [0, 0, 1, 1], [], []>} : vector<8x512xbf16>, vector<512x128xbf16>, vector<8x128xf32> -> vector<8x128xf32>
    %21 = vector.broadcast %5 : vector<1x128xf32> to vector<8x128xf32>
    %22 = arith.addf %20, %21 : vector<8x128xf32>
    %23 = arith.truncf %22 : vector<8x128xf32> to vector<8x128xbf16>
    %c0_17 = arith.constant 0 : index
    %c0_18 = arith.constant 0 : index
    %24 = vector.load %arg8[%c0_17, %c0_18] : memref<8x128xbf16, #tpu.memory_space<vmem>>, vector<8x128xbf16>
    tpu.vector_store %arg8[%c0_17, %c0_18], %23 {strides = array<i32>} : memref<8x128xbf16, #tpu.memory_space<vmem>>, vector<8x128xbf16>,
    return
  }
  func.func @transform_0(%arg0: i32) -> (i32, i32) {
    %c0_i32 = arith.constant 0 : i32
    %c0_i32_0 = arith.constant 0 : i32
    return %arg0, %c0_i32 : i32, i32
  }
  func.func @transform_1(%arg0: i32) -> (i32, i32) {
    %c0_i32 = arith.constant 0 : i32
    %c0_i32_0 = arith.constant 0 : i32
    %c0_i32_1 = arith.constant 0 : i32
    return %c0_i32, %c0_i32_0 : i32, i32
  }
  func.func @transform_2(%arg0: i32) -> (i32, i32) {
    %c0_i32 = arith.constant 0 : i32
    %c0_i32_0 = arith.constant 0 : i32
    %c0_i32_1 = arith.constant 0 : i32
    return %c0_i32, %c0_i32_0 : i32, i32
  }
  func.func @transform_3(%arg0: i32) -> (i32, i32) {
    %c0_i32 = arith.constant 0 : i32
    %c0_i32_0 = arith.constant 0 : i32
    %c0_i32_1 = arith.constant 0 : i32
    return %c0_i32, %c0_i32_0 : i32, i32
  }
  func.func @transform_4(%arg0: i32) -> (i32, i32) {
    %c0_i32 = arith.constant 0 : i32
    %c0_i32_0 = arith.constant 0 : i32
    %c0_i32_1 = arith.constant 0 : i32
    return %c0_i32, %c0_i32_0 : i32, i32
  }
  func.func @transform_5(%arg0: i32) -> (i32, i32) {
    %c0_i32 = arith.constant 0 : i32
    %c0_i32_0 = arith.constant 0 : i32
    %c0_i32_1 = arith.constant 0 : i32
    return %c0_i32, %c0_i32_0 : i32, i32
  }
  func.func @transform_6(%arg0: i32) -> (i32, i32) {
    %c0_i32 = arith.constant 0 : i32
    %c0_i32_0 = arith.constant 0 : i32
    %c0_i32_1 = arith.constant 0 : i32
    return %c0_i32, %c0_i32_0 : i32, i32
  }
  func.func @transform_7(%arg0: i32) -> (i32, i32) {
    %c0_i32 = arith.constant 0 : i32
    %c0_i32_0 = arith.constant 0 : i32
    return %arg0, %c0_i32 : i32, i32
  }
}

</mosaic_0001>

<llo_original>
// kernel: neural_network_forward.1
$region0: #{neural_network_forward.1}
  #allocation0 [shape = 'u32[]', space=smem, size = 0x4, offset = 0x4, fixed_abs, tag = 'smem constant byte address 0x4 - core index']
  #allocation1 [shape = 'u32[144,128]{1,0:T(1,128)}', space=vmem, size = 0x12000, scoped, tag = 'internal scratch']
  %s0 = inlined_call_operand.hbm [shape: f32[8,784], index: 0, kind: input, shape index: {}]
  %s1 = inlined_call_operand.hbm [shape: bf16[784,512], index: 1, kind: input, shape index: {}]
  %s2 = inlined_call_operand.hbm [shape: f32[1,512], index: 2, kind: input, shape index: {}]
  %s3 = inlined_call_operand.hbm [shape: bf16[512,512], index: 3, kind: input, shape index: {}]
  %s4 = inlined_call_operand.hbm [shape: f32[1,512], index: 4, kind: input, shape index: {}]
  %s5 = inlined_call_operand.hbm [shape: bf16[512,128], index: 5, kind: input, shape index: {}]
  %s6 = inlined_call_operand.hbm [shape: f32[1,128], index: 6, kind: input, shape index: {}]
  %s7 = inlined_call_operand.hbm [shape: bf16[8,128], index: 7, kind: output, shape index: {}]
  %s8 = sld [smem:[#allocation0]]
  $region66: #{neural_network_forward.1} parent=0
    _
  %s10 = ssub.s32 1, %s8
  %s11 = scalar_select 0, %s10, %s8
  $region1: #{neural_network_forward.1} parent=0
    #allocation2 [shape = 'u8[28672]{0}', space=vmem, size = 0x7000, scoped, tag = 'input window, operand 0, single buffered']
    #allocation3 [shape = 's32[1]{0}', space=sflag, size = 0x4, scoped, tag = 'scoped memory for neural_network_forward.1']
    #allocation4 [shape = 's32[1]{0}', space=sflag, size = 0x4, scoped, tag = 'scoped memory for neural_network_forward.1']
    #allocation5 [shape = 'u8[802816]{0}', space=vmem, size = 0xc4000, scoped, tag = 'input window, operand 1, single buffered']
    #allocation6 [shape = 's32[1]{0}', space=sflag, size = 0x4, scoped, tag = 'scoped memory for neural_network_forward.1']
    #allocation7 [shape = 'u8[2048]{0}', space=vmem, size = 0x800, scoped, tag = 'input window, operand 2, single buffered']
    #allocation8 [shape = 'u8[524288]{0}', space=vmem, size = 0x80000, scoped, tag = 'input window, operand 3, single buffered']
    #allocation9 [shape = 's32[1]{0}', space=sflag, size = 0x4, scoped, tag = 'scoped memory for neural_network_forward.1']
    #allocation10 [shape = 'u8[2048]{0}', space=vmem, size = 0x800, scoped, tag = 'input window, operand 4, single buffered']
    #allocation11 [shape = 'u8[131072]{0}', space=vmem, size = 0x20000, scoped, tag = 'input window, operand 5, single buffered']
    #allocation12 [shape = 's32[1]{0}', space=sflag, size = 0x4, scoped, tag = 'scoped memory for neural_network_forward.1']
    #allocation13 [shape = 'u8[512]{0}', space=vmem, size = 0x400, scoped, tag = 'input window, operand 6, single buffered']
    #allocation14 [shape = 'u8[2048]{0}', space=vmem, size = 0x800, scoped, tag = 'output window, operand 0, single buffered']
    %12 = vsyncpa [#allocation3], 0
    %13 = vsyncpa [#allocation6], 0
    %14 = vsyncpa [#allocation9], 0
    %15 = vsyncpa [#allocation12], 0
    %16 = vsyncpa [#allocation4], 0
    // Predicated region
    $region2: #{neural_network_forward.1} parent=1 // pred_check
      _
    $region3: #{neural_network_forward.1} parent=1 // pred_check_branch
      %18 = sbr.rel (0) target = $region5
    $region4: #{neural_network_forward.1} parent=1 // pred_region
      %s20 = ssub.s32 896, 896
      %21 = vsyncadd [#allocation3], %s20
      %s23 = sshll.u32 [#allocation2], 4
      %s24 = int_to_ptr.vmem [resolvable:$true] %s23
      %26 = dma.hbm_to_vmem [thread:$0]  %s0, 896, %s24, [#allocation3]
    $region5: #{neural_network_forward.1} parent=1 // pred_fallthru
      _
    // Predicated region
    $region6: #{neural_network_forward.1} parent=1 // pred_check
      _
    $region7: #{neural_network_forward.1} parent=1 // pred_check_branch
      %28 = sbr.rel (0) target = $region9
    $region8: #{neural_network_forward.1} parent=1 // pred_region
      %s30 = ssub.s32 25088, 25088
      %31 = vsyncadd [#allocation6], %s30
      %s32 = sshll.u32 [#allocation5], 4
      %s33 = int_to_ptr.vmem [resolvable:$true] %s32
      %38 = dma.hbm_to_vmem [thread:$0]  %s1, 25088, %s33, [#allocation6], 256, 256, 16
    $region9: #{neural_network_forward.1} parent=1 // pred_fallthru
      _
    // Predicated region
    $region10: #{neural_network_forward.1} parent=1 // pred_check
      _
    $region11: #{neural_network_forward.1} parent=1 // pred_check_branch
      %40 = sbr.rel (0) target = $region13
    $region12: #{neural_network_forward.1} parent=1 // pred_region
      %s42 = ssub.s32 64, 64
      %43 = vsyncadd [#allocation6], %s42
      %s45 = sshll.u32 [#allocation7], 4
      %s46 = int_to_ptr.vmem [resolvable:$true] %s45
      %48 = dma.hbm_to_vmem [thread:$0]  %s2, 64, %s46, [#allocation6]
    $region13: #{neural_network_forward.1} parent=1 // pred_fallthru
      _
    // Predicated region
    $region14: #{neural_network_forward.1} parent=1 // pred_check
      _
    $region15: #{neural_network_forward.1} parent=1 // pred_check_branch
      %50 = sbr.rel (0) target = $region17
    $region16: #{neural_network_forward.1} parent=1 // pred_region
      %s52 = ssub.s32 16384, 16384
      %53 = vsyncadd [#allocation9], %s52
      %s54 = sshll.u32 [#allocation8], 4
      %s55 = int_to_ptr.vmem [resolvable:$true] %s54
      %60 = dma.hbm_to_vmem [thread:$0]  %s3, 16384, %s55, [#allocation9], 256, 256, 16
    $region17: #{neural_network_forward.1} parent=1 // pred_fallthru
      _
    // Predicated region
    $region18: #{neural_network_forward.1} parent=1 // pred_check
      _
    $region19: #{neural_network_forward.1} parent=1 // pred_check_branch
      %62 = sbr.rel (0) target = $region21
    $region20: #{neural_network_forward.1} parent=1 // pred_region
      %s64 = ssub.s32 64, 64
      %65 = vsyncadd [#allocation9], %s64
      %s67 = sshll.u32 [#allocation10], 4
      %s68 = int_to_ptr.vmem [resolvable:$true] %s67
      %70 = dma.hbm_to_vmem [thread:$0]  %s4, 64, %s68, [#allocation9]
    $region21: #{neural_network_forward.1} parent=1 // pred_fallthru
      _
    // Predicated region
    $region22: #{neural_network_forward.1} parent=1 // pred_check
      _
    $region23: #{neural_network_forward.1} parent=1 // pred_check_branch
      %72 = sbr.rel (0) target = $region25
    $region24: #{neural_network_forward.1} parent=1 // pred_region
      %s74 = ssub.s32 4096, 4096
      %75 = vsyncadd [#allocation12], %s74
      %s76 = sshll.u32 [#allocation11], 4
      %s77 = int_to_ptr.vmem [resolvable:$true] %s76
      %82 = dma.hbm_to_vmem [thread:$0]  %s5, 4096, %s77, [#allocation12], 64, 64, 4
    $region25: #{neural_network_forward.1} parent=1 // pred_fallthru
      _
    // Predicated region
    $region26: #{neural_network_forward.1} parent=1 // pred_check
      _
    $region27: #{neural_network_forward.1} parent=1 // pred_check_branch
      %84 = sbr.rel (0) target = $region29
    $region28: #{neural_network_forward.1} parent=1 // pred_region
      %s86 = ssub.s32 16, 16
      %87 = vsyncadd [#allocation12], %s86
      %s89 = sshll.u32 [#allocation13], 4
      %s90 = int_to_ptr.vmem [resolvable:$true] %s89
      %92 = dma.hbm_to_vmem [thread:$0]  %s6, 16, %s90, [#allocation12]
    $region29: #{neural_network_forward.1} parent=1 // pred_fallthru
      _
    // Predicated region
    $region30: #{neural_network_forward.1} parent=1 // pred_check
      _
    $region31: #{neural_network_forward.1} parent=1 // pred_check_branch
      %94 = sbr.rel (0) target = $region33
    $region32: #{neural_network_forward.1} parent=1 // pred_region
      %95 = dma.done [#allocation3], 896
    $region33: #{neural_network_forward.1} parent=1 // pred_fallthru
      _
    // Predicated region
    $region34: #{neural_network_forward.1} parent=1 // pred_check
      _
    $region35: #{neural_network_forward.1} parent=1 // pred_check_branch
      %97 = sbr.rel (0) target = $region37
    $region36: #{neural_network_forward.1} parent=1 // pred_region
      %98 = dma.done [#allocation6], 25088
    $region37: #{neural_network_forward.1} parent=1 // pred_fallthru
      _
    // Predicated region
    $region38: #{neural_network_forward.1} parent=1 // pred_check
      _
    $region39: #{neural_network_forward.1} parent=1 // pred_check_branch
      %100 = sbr.rel (0) target = $region41
    $region40: #{neural_network_forward.1} parent=1 // pred_region
      %101 = dma.done [#allocation6], 64
    $region41: #{neural_network_forward.1} parent=1 // pred_fallthru
      _
    // Predicated region
    $region42: #{neural_network_forward.1} parent=1 // pred_check
      _
    $region43: #{neural_network_forward.1} parent=1 // pred_check_branch
      %103 = sbr.rel (0) target = $region45
    $region44: #{neural_network_forward.1} parent=1 // pred_region
      %104 = dma.done [#allocation9], 16384
    $region45: #{neural_network_forward.1} parent=1 // pred_fallthru
      _
    // Predicated region
    $region46: #{neural_network_forward.1} parent=1 // pred_check
      _
    $region47: #{neural_network_forward.1} parent=1 // pred_check_branch
      %106 = sbr.rel (0) target = $region49
    $region48: #{neural_network_forward.1} parent=1 // pred_region
      %107 = dma.done [#allocation9], 64
    $region49: #{neural_network_forward.1} parent=1 // pred_fallthru
      _
    // Predicated region
    $region50: #{neural_network_forward.1} parent=1 // pred_check
      _
    $region51: #{neural_network_forward.1} parent=1 // pred_check_branch
      %109 = sbr.rel (0) target = $region53
    $region52: #{neural_network_forward.1} parent=1 // pred_region
      %110 = dma.done [#allocation12], 4096
    $region53: #{neural_network_forward.1} parent=1 // pred_fallthru
      _
    // Predicated region
    $region54: #{neural_network_forward.1} parent=1 // pred_check
      _
    $region55: #{neural_network_forward.1} parent=1 // pred_check_branch
      %112 = sbr.rel (0) target = $region57
    $region56: #{neural_network_forward.1} parent=1 // pred_region
      %113 = dma.done [#allocation12], 16
    $region57: #{neural_network_forward.1} parent=1 // pred_fallthru
      _
    %v115 = vld [vmem:[#allocation5] sm:$0xff]
    %v116 = vld [vmem:[#allocation5 + $0x8] sm:$0xff]
    %v117 = vld [vmem:[#allocation5 + $0x10] sm:$0xff]
    %v118 = vld [vmem:[#allocation5 + $0x18] sm:$0xff]
    %v119 = vld [vmem:[#allocation5 + $0x20] sm:$0xff]
    %v120 = vld [vmem:[#allocation5 + $0x28] sm:$0xff]
    %v121 = vld [vmem:[#allocation5 + $0x30] sm:$0xff]
    %v122 = vld [vmem:[#allocation5 + $0x38] sm:$0xff]
    %v123 = vld [vmem:[#allocation5 + $0x40] sm:$0xff]
    %v124 = vld [vmem:[#allocation5 + $0x48] sm:$0xff]
    %v125 = vld [vmem:[#allocation5 + $0x50] sm:$0xff]
    %v126 = vld [vmem:[#allocation5 + $0x58] sm:$0xff]
    %v127 = vld [vmem:[#allocation5 + $0x60] sm:$0xff]
    %v128 = vld [vmem:[#allocation5 + $0x68] sm:$0xff]
    %v129 = vld [vmem:[#allocation5 + $0x70] sm:$0xff]
    %v130 = vld [vmem:[#allocation5 + $0x78] sm:$0xff]
    %v131 = vld [vmem:[#allocation5 + $0x80] sm:$0xff]
    %v132 = vld [vmem:[#allocation5 + $0x88] sm:$0xff]
    %v133 = vld [vmem:[#allocation5 + $0x90] sm:$0xff]
    %v134 = vld [vmem:[#allocation5 + $0x98] sm:$0xff]
    %v135 = vld [vmem:[#allocation5 + $0xa0] sm:$0xff]
    %v136 = vld [vmem:[#allocation5 + $0xa8] sm:$0xff]
    %v137 = vld [vmem:[#allocation5 + $0xb0] sm:$0xff]
    %v138 = vld [vmem:[#allocation5 + $0xb8] sm:$0xff]
    %v139 = vld [vmem:[#allocation5 + $0xc0] sm:$0xff]
    %v140 = vld [vmem:[#allocation5 + $0xc8] sm:$0xff]
    %v141 = vld [vmem:[#allocation5 + $0xd0] sm:$0xff]
    %v142 = vld [vmem:[#allocation5 + $0xd8] sm:$0xff]
    %v143 = vld [vmem:[#allocation5 + $0xe0] sm:$0xff]
    %v144 = vld [vmem:[#allocation5 + $0xe8] sm:$0xff]
    %v145 = vld [vmem:[#allocation5 + $0xf0] sm:$0xff]
    %v146 = vld [vmem:[#allocation5 + $0xf8] sm:$0xff]
    %v147 = vld [vmem:[#allocation5 + $0x100] sm:$0xff]
    %v148 = vld [vmem:[#allocation5 + $0x108] sm:$0xff]
    %v149 = vld [vmem:[#allocation5 + $0x110] sm:$0xff]
    %v150 = vld [vmem:[#allocation5 + $0x118] sm:$0xff]
    %v151 = vld [vmem:[#allocation5 + $0x120] sm:$0xff]
    %v152 = vld [vmem:[#allocation5 + $0x128] sm:$0xff]
    %v153 = vld [vmem:[#allocation5 + $0x130] sm:$0xff]
    %v154 = vld [vmem:[#allocation5 + $0x138] sm:$0xff]
    %v155 = vld [vmem:[#allocation5 + $0x140] sm:$0xff]
    %v156 = vld [vmem:[#allocation5 + $0x148] sm:$0xff]
    %v157 = vld [vmem:[#allocation5 + $0x150] sm:$0xff]
    %v158 = vld [vmem:[#allocation5 + $0x158] sm:$0xff]
    %v159 = vld [vmem:[#allocation5 + $0x160] sm:$0xff]
    %v160 = vld [vmem:[#allocation5 + $0x168] sm:$0xff]
    %v161 = vld [vmem:[#allocation5 + $0x170] sm:$0xff]
    %v162 = vld [vmem:[#allocation5 + $0x178] sm:$0xff]
    %v163 = vld [vmem:[#allocation5 + $0x180] sm:$0xff]
    %v164 = vld [vmem:[#allocation5 + $0x188] sm:$0xff]
    %v165 = vld [vmem:[#allocation5 + $0x190] sm:$0xff]
    %v166 = vld [vmem:[#allocation5 + $0x198] sm:$0xff]
    %v167 = vld [vmem:[#allocation5 + $0x1a0] sm:$0xff]
    %v168 = vld [vmem:[#allocation5 + $0x1a8] sm:$0xff]
    %v169 = vld [vmem:[#allocation5 + $0x1b0] sm:$0xff]
    %v170 = vld [vmem:[#allocation5 + $0x1b8] sm:$0xff]
    %v171 = vld [vmem:[#allocation5 + $0x1c0] sm:$0xff]
    %v172 = vld [vmem:[#allocation5 + $0x1c8] sm:$0xff]
    %v173 = vld [vmem:[#allocation5 + $0x1d0] sm:$0xff]
    %v174 = vld [vmem:[#allocation5 + $0x1d8] sm:$0xff]
    %v175 = vld [vmem:[#allocation5 + $0x1e0] sm:$0xff]
    %v176 = vld [vmem:[#allocation5 + $0x1e8] sm:$0xff]
    %v177 = vld [vmem:[#allocation5 + $0x1f0] sm:$0xff]
    %v178 = vld [vmem:[#allocation5 + $0x1f8] sm:$0xff]
    %v179 = vld [vmem:[#allocation5 + $0x200] sm:$0xff]
    %v180 = vld [vmem:[#allocation5 + $0x208] sm:$0xff]
    %v181 = vld [vmem:[#allocation5 + $0x210] sm:$0xff]
    %v182 = vld [vmem:[#allocation5 + $0x218] sm:$0xff]
    %v183 = vld [vmem:[#allocation5 + $0x220] sm:$0xff]
    %v184 = vld [vmem:[#allocation5 + $0x228] sm:$0xff]
    %v185 = vld [vmem:[#allocation5 + $0x230] sm:$0xff]
    %v186 = vld [vmem:[#allocation5 + $0x238] sm:$0xff]
    %v187 = vld [vmem:[#allocation5 + $0x240] sm:$0xff]
    %v188 = vld [vmem:[#allocation5 + $0x248] sm:$0xff]
    %v189 = vld [vmem:[#allocation5 + $0x250] sm:$0xff]
    %v190 = vld [vmem:[#allocation5 + $0x258] sm:$0xff]
    %v191 = vld [vmem:[#allocation5 + $0x260] sm:$0xff]
    %v192 = vld [vmem:[#allocation5 + $0x268] sm:$0xff]
    %v193 = vld [vmem:[#allocation5 + $0x270] sm:$0xff]
    %v194 = vld [vmem:[#allocation5 + $0x278] sm:$0xff]
    %v195 = vld [vmem:[#allocation5 + $0x280] sm:$0xff]
    %v196 = vld [vmem:[#allocation5 + $0x288] sm:$0xff]
    %v197 = vld [vmem:[#allocation5 + $0x290] sm:$0xff]
    %v198 = vld [vmem:[#allocation5 + $0x298] sm:$0xff]
    %v199 = vld [vmem:[#allocation5 + $0x2a0] sm:$0xff]
    %v200 = vld [vmem:[#allocation5 + $0x2a8] sm:$0xff]
    %v201 = vld [vmem:[#allocation5 + $0x2b0] sm:$0xff]
    %v202 = vld [vmem:[#allocation5 + $0x2b8] sm:$0xff]
    %v203 = vld [vmem:[#allocation5 + $0x2c0] sm:$0xff]
    %v204 = vld [vmem:[#allocation5 + $0x2c8] sm:$0xff]
    %v205 = vld [vmem:[#allocation5 + $0x2d0] sm:$0xff]
    %v206 = vld [vmem:[#allocation5 + $0x2d8] sm:$0xff]
    %v207 = vld [vmem:[#allocation5 + $0x2e0] sm:$0xff]
    %v208 = vld [vmem:[#allocation5 + $0x2e8] sm:$0xff]
    %v209 = vld [vmem:[#allocation5 + $0x2f0] sm:$0xff]
    %v210 = vld [vmem:[#allocation5 + $0x2f8] sm:$0xff]
    %v211 = vld [vmem:[#allocation5 + $0x300] sm:$0xff]
    %v212 = vld [vmem:[#allocation5 + $0x308] sm:$0xff]
    %v213 = vld [vmem:[#allocation5 + $0x310] sm:$0xff]
    %v214 = vld [vmem:[#allocation5 + $0x318] sm:$0xff]
    %v215 = vld [vmem:[#allocation5 + $0x320] sm:$0xff]
    %v216 = vld [vmem:[#allocation5 + $0x328] sm:$0xff]
    %v217 = vld [vmem:[#allocation5 + $0x330] sm:$0xff]
    %v218 = vld [vmem:[#allocation5 + $0x338] sm:$0xff]
    %v219 = vld [vmem:[#allocation5 + $0x340] sm:$0xff]
    %v220 = vld [vmem:[#allocation5 + $0x348] sm:$0xff]
    %v221 = vld [vmem:[#allocation5 + $0x350] sm:$0xff]
    %v222 = vld [vmem:[#allocation5 + $0x358] sm:$0xff]
    %v223 = vld [vmem:[#allocation5 + $0x360] sm:$0xff]
    %v224 = vld [vmem:[#allocation5 + $0x368] sm:$0xff]
    %v225 = vld [vmem:[#allocation5 + $0x370] sm:$0xff]
    %v226 = vld [vmem:[#allocation5 + $0x378] sm:$0xff]
    %v227 = vld [vmem:[#allocation5 + $0x380] sm:$0xff]
    %v228 = vld [vmem:[#allocation5 + $0x388] sm:$0xff]
    %v229 = vld [vmem:[#allocation5 + $0x390] sm:$0xff]
    %v230 = vld [vmem:[#allocation5 + $0x398] sm:$0xff]
    %v231 = vld [vmem:[#allocation5 + $0x3a0] sm:$0xff]
    %v232 = vld [vmem:[#allocation5 + $0x3a8] sm:$0xff]
    %v233 = vld [vmem:[#allocation5 + $0x3b0] sm:$0xff]
    %v234 = vld [vmem:[#allocation5 + $0x3b8] sm:$0xff]
    %v235 = vld [vmem:[#allocation5 + $0x3c0] sm:$0xff]
    %v236 = vld [vmem:[#allocation5 + $0x3c8] sm:$0xff]
    %v237 = vld [vmem:[#allocation5 + $0x3d0] sm:$0xff]
    %v238 = vld [vmem:[#allocation5 + $0x3d8] sm:$0xff]
    %v239 = vld [vmem:[#allocation5 + $0x3e0] sm:$0xff]
    %v240 = vld [vmem:[#allocation5 + $0x3e8] sm:$0xff]
    %v241 = vld [vmem:[#allocation5 + $0x3f0] sm:$0xff]
    %v242 = vld [vmem:[#allocation5 + $0x3f8] sm:$0xff]
    %v243 = vld [vmem:[#allocation5 + $0x400] sm:$0xff]
    %v244 = vld [vmem:[#allocation5 + $0x408] sm:$0xff]
    %v245 = vld [vmem:[#allocation5 + $0x410] sm:$0xff]
    %v246 = vld [vmem:[#allocation5 + $0x418] sm:$0xff]
    %v247 = vld [vmem:[#allocation5 + $0x420] sm:$0xff]
    %v248 = vld [vmem:[#allocation5 + $0x428] sm:$0xff]
    %v249 = vld [vmem:[#allocation5 + $0x430] sm:$0xff]
    %v250 = vld [vmem:[#allocation5 + $0x438] sm:$0xff]
    %v251 = vld [vmem:[#allocation5 + $0x440] sm:$0xff]
    %v252 = vld [vmem:[#allocation5 + $0x448] sm:$0xff]
    %v253 = vld [vmem:[#allocation5 + $0x450] sm:$0xff]
    %v254 = vld [vmem:[#allocation5 + $0x458] sm:$0xff]
    %v255 = vld [vmem:[#allocation5 + $0x460] sm:$0xff]
    %v256 = vld [vmem:[#allocation5 + $0x468] sm:$0xff]
    %v257 = vld [vmem:[#allocation5 + $0x470] sm:$0xff]
    %v258 = vld [vmem:[#allocation5 + $0x478] sm:$0xff]
    %v259 = vld [vmem:[#allocation5 + $0x480] sm:$0xff]
    %v260 = vld [vmem:[#allocation5 + $0x488] sm:$0xff]
    %v261 = vld [vmem:[#allocation5 + $0x490] sm:$0xff]
    %v262 = vld [vmem:[#allocation5 + $0x498] sm:$0xff]
    %v263 = vld [vmem:[#allocation5 + $0x4a0] sm:$0xff]
    %v264 = vld [vmem:[#allocation5 + $0x4a8] sm:$0xff]
    %v265 = vld [vmem:[#allocation5 + $0x4b0] sm:$0xff]
    %v266 = vld [vmem:[#allocation5 + $0x4b8] sm:$0xff]
    %v267 = vld [vmem:[#allocation5 + $0x4c0] sm:$0xff]
    %v268 = vld [vmem:[#allocation5 + $0x4c8] sm:$0xff]
    %v269 = vld [vmem:[#allocation5 + $0x4d0] sm:$0xff]
    %v270 = vld [vmem:[#allocation5 + $0x4d8] sm:$0xff]
    %v271 = vld [vmem:[#allocation5 + $0x4e0] sm:$0xff]
    %v272 = vld [vmem:[#allocation5 + $0x4e8] sm:$0xff]
    %v273 = vld [vmem:[#allocation5 + $0x4f0] sm:$0xff]
    %v274 = vld [vmem:[#allocation5 + $0x4f8] sm:$0xff]
    %v275 = vld [vmem:[#allocation5 + $0x500] sm:$0xff]
    %v276 = vld [vmem:[#allocation5 + $0x508] sm:$0xff]
    %v277 = vld [vmem:[#allocation5 + $0x510] sm:$0xff]
    %v278 = vld [vmem:[#allocation5 + $0x518] sm:$0xff]
    %v279 = vld [vmem:[#allocation5 + $0x520] sm:$0xff]
    %v280 = vld [vmem:[#allocation5 + $0x528] sm:$0xff]
    %v281 = vld [vmem:[#allocation5 + $0x530] sm:$0xff]
    %v282 = vld [vmem:[#allocation5 + $0x538] sm:$0xff]
    %v283 = vld [vmem:[#allocation5 + $0x540] sm:$0xff]
    %v284 = vld [vmem:[#allocation5 + $0x548] sm:$0xff]
    %v285 = vld [vmem:[#allocation5 + $0x550] sm:$0xff]
    %v286 = vld [vmem:[#allocation5 + $0x558] sm:$0xff]
    %v287 = vld [vmem:[#allocation5 + $0x560] sm:$0xff]
    %v288 = vld [vmem:[#allocation5 + $0x568] sm:$0xff]
    %v289 = vld [vmem:[#allocation5 + $0x570] sm:$0xff]
    %v290 = vld [vmem:[#allocation5 + $0x578] sm:$0xff]
    %v291 = vld [vmem:[#allocation5 + $0x580] sm:$0xff]
    %v292 = vld [vmem:[#allocation5 + $0x588] sm:$0xff]
    %v293 = vld [vmem:[#allocation5 + $0x590] sm:$0xff]
    %v294 = vld [vmem:[#allocation5 + $0x598] sm:$0xff]
    %v295 = vld [vmem:[#allocation5 + $0x5a0] sm:$0xff]
    %v296 = vld [vmem:[#allocation5 + $0x5a8] sm:$0xff]
    %v297 = vld [vmem:[#allocation5 + $0x5b0] sm:$0xff]
    %v298 = vld [vmem:[#allocation5 + $0x5b8] sm:$0xff]
    %v299 = vld [vmem:[#allocation5 + $0x5c0] sm:$0xff]
    %v300 = vld [vmem:[#allocation5 + $0x5c8] sm:$0xff]
    %v301 = vld [vmem:[#allocation5 + $0x5d0] sm:$0xff]
    %v302 = vld [vmem:[#allocation5 + $0x5d8] sm:$0xff]
    %v303 = vld [vmem:[#allocation5 + $0x5e0] sm:$0xff]
    %v304 = vld [vmem:[#allocation5 + $0x5e8] sm:$0xff]
    %v305 = vld [vmem:[#allocation5 + $0x5f0] sm:$0xff]
    %v306 = vld [vmem:[#allocation5 + $0x5f8] sm:$0xff]
    %v307 = vld [vmem:[#allocation5 + $0x600] sm:$0xff]
    %v308 = vld [vmem:[#allocation5 + $0x608] sm:$0xff]
    %v309 = vld [vmem:[#allocation5 + $0x610] sm:$0xff]
    %v310 = vld [vmem:[#allocation5 + $0x618] sm:$0xff]
    %v311 = vld [vmem:[#allocation8] sm:$0xff]
    %v312 = vld [vmem:[#allocation8 + $0x8] sm:$0xff]
    %v313 = vld [vmem:[#allocation8 + $0x10] sm:$0xff]
    %v314 = vld [vmem:[#allocation8 + $0x18] sm:$0xff]
    %v315 = vld [vmem:[#allocation8 + $0x20] sm:$0xff]
    %v316 = vld [vmem:[#allocation8 + $0x28] sm:$0xff]
    %v317 = vld [vmem:[#allocation8 + $0x30] sm:$0xff]
    %v318 = vld [vmem:[#allocation8 + $0x38] sm:$0xff]
    %v319 = vld [vmem:[#allocation8 + $0x40] sm:$0xff]
    %v320 = vld [vmem:[#allocation8 + $0x48] sm:$0xff]
    %v321 = vld [vmem:[#allocation8 + $0x50] sm:$0xff]
    %v322 = vld [vmem:[#allocation8 + $0x58] sm:$0xff]
    %v323 = vld [vmem:[#allocation8 + $0x60] sm:$0xff]
    %v324 = vld [vmem:[#allocation8 + $0x68] sm:$0xff]
    %v325 = vld [vmem:[#allocation8 + $0x70] sm:$0xff]
    %v326 = vld [vmem:[#allocation8 + $0x78] sm:$0xff]
    %v327 = vld [vmem:[#allocation8 + $0x80] sm:$0xff]
    %v328 = vld [vmem:[#allocation8 + $0x88] sm:$0xff]
    %v329 = vld [vmem:[#allocation8 + $0x90] sm:$0xff]
    %v330 = vld [vmem:[#allocation8 + $0x98] sm:$0xff]
    %v331 = vld [vmem:[#allocation8 + $0xa0] sm:$0xff]
    %v332 = vld [vmem:[#allocation8 + $0xa8] sm:$0xff]
    %v333 = vld [vmem:[#allocation8 + $0xb0] sm:$0xff]
    %v334 = vld [vmem:[#allocation8 + $0xb8] sm:$0xff]
    %v335 = vld [vmem:[#allocation8 + $0xc0] sm:$0xff]
    %v336 = vld [vmem:[#allocation8 + $0xc8] sm:$0xff]
    %v337 = vld [vmem:[#allocation8 + $0xd0] sm:$0xff]
    %v338 = vld [vmem:[#allocation8 + $0xd8] sm:$0xff]
    %v339 = vld [vmem:[#allocation8 + $0xe0] sm:$0xff]
    %v340 = vld [vmem:[#allocation8 + $0xe8] sm:$0xff]
    %v341 = vld [vmem:[#allocation8 + $0xf0] sm:$0xff]
    %v342 = vld [vmem:[#allocation8 + $0xf8] sm:$0xff]
    %v343 = vld [vmem:[#allocation8 + $0x100] sm:$0xff]
    %v344 = vld [vmem:[#allocation8 + $0x108] sm:$0xff]
    %v345 = vld [vmem:[#allocation8 + $0x110] sm:$0xff]
    %v346 = vld [vmem:[#allocation8 + $0x118] sm:$0xff]
    %v347 = vld [vmem:[#allocation8 + $0x120] sm:$0xff]
    %v348 = vld [vmem:[#allocation8 + $0x128] sm:$0xff]
    %v349 = vld [vmem:[#allocation8 + $0x130] sm:$0xff]
    %v350 = vld [vmem:[#allocation8 + $0x138] sm:$0xff]
    %v351 = vld [vmem:[#allocation8 + $0x140] sm:$0xff]
    %v352 = vld [vmem:[#allocation8 + $0x148] sm:$0xff]
    %v353 = vld [vmem:[#allocation8 + $0x150] sm:$0xff]
    %v354 = vld [vmem:[#allocation8 + $0x158] sm:$0xff]
    %v355 = vld [vmem:[#allocation8 + $0x160] sm:$0xff]
    %v356 = vld [vmem:[#allocation8 + $0x168] sm:$0xff]
    %v357 = vld [vmem:[#allocation8 + $0x170] sm:$0xff]
    %v358 = vld [vmem:[#allocation8 + $0x178] sm:$0xff]
    %v359 = vld [vmem:[#allocation8 + $0x180] sm:$0xff]
    %v360 = vld [vmem:[#allocation8 + $0x188] sm:$0xff]
    %v361 = vld [vmem:[#allocation8 + $0x190] sm:$0xff]
    %v362 = vld [vmem:[#allocation8 + $0x198] sm:$0xff]
    %v363 = vld [vmem:[#allocation8 + $0x1a0] sm:$0xff]
    %v364 = vld [vmem:[#allocation8 + $0x1a8] sm:$0xff]
    %v365 = vld [vmem:[#allocation8 + $0x1b0] sm:$0xff]
    %v366 = vld [vmem:[#allocation8 + $0x1b8] sm:$0xff]
    %v367 = vld [vmem:[#allocation8 + $0x1c0] sm:$0xff]
    %v368 = vld [vmem:[#allocation8 + $0x1c8] sm:$0xff]
    %v369 = vld [vmem:[#allocation8 + $0x1d0] sm:$0xff]
    %v370 = vld [vmem:[#allocation8 + $0x1d8] sm:$0xff]
    %v371 = vld [vmem:[#allocation8 + $0x1e0] sm:$0xff]
    %v372 = vld [vmem:[#allocation8 + $0x1e8] sm:$0xff]
    %v373 = vld [vmem:[#allocation8 + $0x1f0] sm:$0xff]
    %v374 = vld [vmem:[#allocation8 + $0x1f8] sm:$0xff]
    %v375 = vld [vmem:[#allocation8 + $0x200] sm:$0xff]
    %v376 = vld [vmem:[#allocation8 + $0x208] sm:$0xff]
    %v377 = vld [vmem:[#allocation8 + $0x210] sm:$0xff]
    %v378 = vld [vmem:[#allocation8 + $0x218] sm:$0xff]
    %v379 = vld [vmem:[#allocation8 + $0x220] sm:$0xff]
    %v380 = vld [vmem:[#allocation8 + $0x228] sm:$0xff]
    %v381 = vld [vmem:[#allocation8 + $0x230] sm:$0xff]
    %v382 = vld [vmem:[#allocation8 + $0x238] sm:$0xff]
    %v383 = vld [vmem:[#allocation8 + $0x240] sm:$0xff]
    %v384 = vld [vmem:[#allocation8 + $0x248] sm:$0xff]
    %v385 = vld [vmem:[#allocation8 + $0x250] sm:$0xff]
    %v386 = vld [vmem:[#allocation8 + $0x258] sm:$0xff]
    %v387 = vld [vmem:[#allocation8 + $0x260] sm:$0xff]
    %v388 = vld [vmem:[#allocation8 + $0x268] sm:$0xff]
    %v389 = vld [vmem:[#allocation8 + $0x270] sm:$0xff]
    %v390 = vld [vmem:[#allocation8 + $0x278] sm:$0xff]
    %v391 = vld [vmem:[#allocation8 + $0x280] sm:$0xff]
    %v392 = vld [vmem:[#allocation8 + $0x288] sm:$0xff]
    %v393 = vld [vmem:[#allocation8 + $0x290] sm:$0xff]
    %v394 = vld [vmem:[#allocation8 + $0x298] sm:$0xff]
    %v395 = vld [vmem:[#allocation8 + $0x2a0] sm:$0xff]
    %v396 = vld [vmem:[#allocation8 + $0x2a8] sm:$0xff]
    %v397 = vld [vmem:[#allocation8 + $0x2b0] sm:$0xff]
    %v398 = vld [vmem:[#allocation8 + $0x2b8] sm:$0xff]
    %v399 = vld [vmem:[#allocation8 + $0x2c0] sm:$0xff]
    %v400 = vld [vmem:[#allocation8 + $0x2c8] sm:$0xff]
    %v401 = vld [vmem:[#allocation8 + $0x2d0] sm:$0xff]
    %v402 = vld [vmem:[#allocation8 + $0x2d8] sm:$0xff]
    %v403 = vld [vmem:[#allocation8 + $0x2e0] sm:$0xff]
    %v404 = vld [vmem:[#allocation8 + $0x2e8] sm:$0xff]
    %v405 = vld [vmem:[#allocation8 + $0x2f0] sm:$0xff]
    %v406 = vld [vmem:[#allocation8 + $0x2f8] sm:$0xff]
    %v407 = vld [vmem:[#allocation8 + $0x300] sm:$0xff]
    %v408 = vld [vmem:[#allocation8 + $0x308] sm:$0xff]
    %v409 = vld [vmem:[#allocation8 + $0x310] sm:$0xff]
    %v410 = vld [vmem:[#allocation8 + $0x318] sm:$0xff]
    %v411 = vld [vmem:[#allocation8 + $0x320] sm:$0xff]
    %v412 = vld [vmem:[#allocation8 + $0x328] sm:$0xff]
    %v413 = vld [vmem:[#allocation8 + $0x330] sm:$0xff]
    %v414 = vld [vmem:[#allocation8 + $0x338] sm:$0xff]
    %v415 = vld [vmem:[#allocation8 + $0x340] sm:$0xff]
    %v416 = vld [vmem:[#allocation8 + $0x348] sm:$0xff]
    %v417 = vld [vmem:[#allocation8 + $0x350] sm:$0xff]
    %v418 = vld [vmem:[#allocation8 + $0x358] sm:$0xff]
    %v419 = vld [vmem:[#allocation8 + $0x360] sm:$0xff]
    %v420 = vld [vmem:[#allocation8 + $0x368] sm:$0xff]
    %v421 = vld [vmem:[#allocation8 + $0x370] sm:$0xff]
    %v422 = vld [vmem:[#allocation8 + $0x378] sm:$0xff]
    %v423 = vld [vmem:[#allocation8 + $0x380] sm:$0xff]
    %v424 = vld [vmem:[#allocation8 + $0x388] sm:$0xff]
    %v425 = vld [vmem:[#allocation8 + $0x390] sm:$0xff]
    %v426 = vld [vmem:[#allocation8 + $0x398] sm:$0xff]
    %v427 = vld [vmem:[#allocation8 + $0x3a0] sm:$0xff]
    %v428 = vld [vmem:[#allocation8 + $0x3a8] sm:$0xff]
    %v429 = vld [vmem:[#allocation8 + $0x3b0] sm:$0xff]
    %v430 = vld [vmem:[#allocation8 + $0x3b8] sm:$0xff]
    %v431 = vld [vmem:[#allocation8 + $0x3c0] sm:$0xff]
    %v432 = vld [vmem:[#allocation8 + $0x3c8] sm:$0xff]
    %v433 = vld [vmem:[#allocation8 + $0x3d0] sm:$0xff]
    %v434 = vld [vmem:[#allocation8 + $0x3d8] sm:$0xff]
    %v435 = vld [vmem:[#allocation8 + $0x3e0] sm:$0xff]
    %v436 = vld [vmem:[#allocation8 + $0x3e8] sm:$0xff]
    %v437 = vld [vmem:[#allocation8 + $0x3f0] sm:$0xff]
    %v438 = vld [vmem:[#allocation8 + $0x3f8] sm:$0xff]
    %v439 = vld [vmem:[#allocation11] sm:$0xf]
    %v440 = vld [vmem:[#allocation11 + $0x4] sm:$0xf]
    %v441 = vld [vmem:[#allocation11 + $0x8] sm:$0xf]
    %v442 = vld [vmem:[#allocation11 + $0xc] sm:$0xf]
    %v443 = vld [vmem:[#allocation11 + $0x10] sm:$0xf]
    %v444 = vld [vmem:[#allocation11 + $0x14] sm:$0xf]
    %v445 = vld [vmem:[#allocation11 + $0x18] sm:$0xf]
    %v446 = vld [vmem:[#allocation11 + $0x1c] sm:$0xf]
    %v447 = vld [vmem:[#allocation11 + $0x20] sm:$0xf]
    %v448 = vld [vmem:[#allocation11 + $0x24] sm:$0xf]
    %v449 = vld [vmem:[#allocation11 + $0x28] sm:$0xf]
    %v450 = vld [vmem:[#allocation11 + $0x2c] sm:$0xf]
    %v451 = vld [vmem:[#allocation11 + $0x30] sm:$0xf]
    %v452 = vld [vmem:[#allocation11 + $0x34] sm:$0xf]
    %v453 = vld [vmem:[#allocation11 + $0x38] sm:$0xf]
    %v454 = vld [vmem:[#allocation11 + $0x3c] sm:$0xf]
    %v455 = vld [vmem:[#allocation11 + $0x40] sm:$0xf]
    %v456 = vld [vmem:[#allocation11 + $0x44] sm:$0xf]
    %v457 = vld [vmem:[#allocation11 + $0x48] sm:$0xf]
    %v458 = vld [vmem:[#allocation11 + $0x4c] sm:$0xf]
    %v459 = vld [vmem:[#allocation11 + $0x50] sm:$0xf]
    %v460 = vld [vmem:[#allocation11 + $0x54] sm:$0xf]
    %v461 = vld [vmem:[#allocation11 + $0x58] sm:$0xf]
    %v462 = vld [vmem:[#allocation11 + $0x5c] sm:$0xf]
    %v463 = vld [vmem:[#allocation11 + $0x60] sm:$0xf]
    %v464 = vld [vmem:[#allocation11 + $0x64] sm:$0xf]
    %v465 = vld [vmem:[#allocation11 + $0x68] sm:$0xf]
    %v466 = vld [vmem:[#allocation11 + $0x6c] sm:$0xf]
    %v467 = vld [vmem:[#allocation11 + $0x70] sm:$0xf]
    %v468 = vld [vmem:[#allocation11 + $0x74] sm:$0xf]
    %v469 = vld [vmem:[#allocation11 + $0x78] sm:$0xf]
    %v470 = vld [vmem:[#allocation11 + $0x7c] sm:$0xf]
    %v471 = vld [vmem:[#allocation11 + $0x80] sm:$0xf]
    %v472 = vld [vmem:[#allocation11 + $0x84] sm:$0xf]
    %v473 = vld [vmem:[#allocation11 + $0x88] sm:$0xf]
    %v474 = vld [vmem:[#allocation11 + $0x8c] sm:$0xf]
    %v475 = vld [vmem:[#allocation11 + $0x90] sm:$0xf]
    %v476 = vld [vmem:[#allocation11 + $0x94] sm:$0xf]
    %v477 = vld [vmem:[#allocation11 + $0x98] sm:$0xf]
    %v478 = vld [vmem:[#allocation11 + $0x9c] sm:$0xf]
    %v479 = vld [vmem:[#allocation11 + $0xa0] sm:$0xf]
    %v480 = vld [vmem:[#allocation11 + $0xa4] sm:$0xf]
    %v481 = vld [vmem:[#allocation11 + $0xa8] sm:$0xf]
    %v482 = vld [vmem:[#allocation11 + $0xac] sm:$0xf]
    %v483 = vld [vmem:[#allocation11 + $0xb0] sm:$0xf]
    %v484 = vld [vmem:[#allocation11 + $0xb4] sm:$0xf]
    %v485 = vld [vmem:[#allocation11 + $0xb8] sm:$0xf]
    %v486 = vld [vmem:[#allocation11 + $0xbc] sm:$0xf]
    %v487 = vld [vmem:[#allocation11 + $0xc0] sm:$0xf]
    %v488 = vld [vmem:[#allocation11 + $0xc4] sm:$0xf]
    %v489 = vld [vmem:[#allocation11 + $0xc8] sm:$0xf]
    %v490 = vld [vmem:[#allocation11 + $0xcc] sm:$0xf]
    %v491 = vld [vmem:[#allocation11 + $0xd0] sm:$0xf]
    %v492 = vld [vmem:[#allocation11 + $0xd4] sm:$0xf]
    %v493 = vld [vmem:[#allocation11 + $0xd8] sm:$0xf]
    %v494 = vld [vmem:[#allocation11 + $0xdc] sm:$0xf]
    %v495 = vld [vmem:[#allocation11 + $0xe0] sm:$0xf]
    %v496 = vld [vmem:[#allocation11 + $0xe4] sm:$0xf]
    %v497 = vld [vmem:[#allocation11 + $0xe8] sm:$0xf]
    %v498 = vld [vmem:[#allocation11 + $0xec] sm:$0xf]
    %v499 = vld [vmem:[#allocation11 + $0xf0] sm:$0xf]
    %v500 = vld [vmem:[#allocation11 + $0xf4] sm:$0xf]
    %v501 = vld [vmem:[#allocation11 + $0xf8] sm:$0xf]
    %v502 = vld [vmem:[#allocation11 + $0xfc] sm:$0xf]
    %v503 = vld [vmem:[#allocation7] sm:$0xf]
    %v504 = vld [vmem:[#allocation10] sm:$0xf]
    %v505 = vld [vmem:[#allocation13] sm:$0x1]
    %v506 = vld [vmem:[#allocation2] sm:$0xff]
    %v507 = vld [vmem:[#allocation2 + $0x8] sm:$0xff]
    %v508 = vld [vmem:[#allocation2 + $0x10] sm:$0xff]
    %v509 = vld [vmem:[#allocation2 + $0x18] sm:$0xff]
    %v510 = vld [vmem:[#allocation2 + $0x20] sm:$0xff]
    %v511 = vld [vmem:[#allocation2 + $0x28] sm:$0xff]
    %v512 = vld [vmem:[#allocation2 + $0x30] sm:$0xff]
    %v513 = vpack.c.bf16 %v506, %v506
    %v514 = vpack.c.bf16 %v507, %v507
    %v515 = vpack.c.bf16 %v508, %v508
    %v516 = vpack.c.bf16 %v509, %v509
    %v517 = vpack.c.bf16 %v510, %v510
    %v518 = vpack.c.bf16 %v511, %v511
    %v519 = vpack.c.bf16 %v512, %v512
    %v521 = vlaneseq
    %v522 = vshrl.u32 %v521, 7
    %v523 = vsub.s32 0, %v522
    %v524 = vrot.slane %v503, %v523
    %v525 = vlaneseq
    %v526 = vshrl.u32 %v525, 7
    %v527 = vsub.s32 1, %v526
    %v528 = vrot.slane %v503, %v527
    %v529 = vlaneseq
    %v530 = vshrl.u32 %v529, 7
    %v531 = vsub.s32 2, %v530
    %v532 = vrot.slane %v503, %v531
    %v533 = vlaneseq
    %v534 = vshrl.u32 %v533, 7
    %v535 = vsub.s32 3, %v534
    %v536 = vrot.slane %v503, %v535
    %v737 = vunpack.c.l.b16 %v115
    %v738 = vunpack.c.h.b16 %v115
    %v739 = vunpack.c.l.b16 %v116
    %v740 = vunpack.c.h.b16 %v116
    %v741 = vunpack.c.l.b16 %v117
    %v742 = vunpack.c.h.b16 %v117
    %v743 = vunpack.c.l.b16 %v118
    %v744 = vunpack.c.h.b16 %v118
    %v745 = vunpack.c.l.b16 %v119
    %v746 = vunpack.c.h.b16 %v119
    %v747 = vunpack.c.l.b16 %v120
    %v748 = vunpack.c.h.b16 %v120
    %v749 = vunpack.c.l.b16 %v121
    %v750 = vunpack.c.h.b16 %v121
    %v751 = vunpack.c.l.b16 %v122
    %v752 = vunpack.c.h.b16 %v122
    %v753 = vunpack.c.l.b16 %v123
    %v754 = vunpack.c.h.b16 %v123
    %v755 = vunpack.c.l.b16 %v124
    %v756 = vunpack.c.h.b16 %v124
    %v757 = vunpack.c.l.b16 %v125
    %v758 = vunpack.c.h.b16 %v125
    %v759 = vunpack.c.l.b16 %v126
    %v760 = vunpack.c.h.b16 %v126
    %v761 = vunpack.c.l.b16 %v127
    %v762 = vunpack.c.h.b16 %v127
    %v763 = vunpack.c.l.b16 %v128
    %v764 = vunpack.c.h.b16 %v128
    %v765 = vunpack.c.l.b16 %v129
    %v766 = vunpack.c.h.b16 %v129
    %v767 = vunpack.c.l.b16 %v130
    %v768 = vunpack.c.h.b16 %v130
    %v769 = vunpack.c.l.b16 %v131
    %v770 = vunpack.c.h.b16 %v131
    %v771 = vunpack.c.l.b16 %v132
    %v772 = vunpack.c.h.b16 %v132
    %v773 = vunpack.c.l.b16 %v133
    %v774 = vunpack.c.h.b16 %v133
    %v775 = vunpack.c.l.b16 %v134
    %v776 = vunpack.c.h.b16 %v134
    %v777 = vunpack.c.l.b16 %v135
    %v778 = vunpack.c.h.b16 %v135
    %v779 = vunpack.c.l.b16 %v136
    %v780 = vunpack.c.h.b16 %v136
    %v781 = vunpack.c.l.b16 %v137
    %v782 = vunpack.c.h.b16 %v137
    %v783 = vunpack.c.l.b16 %v138
    %v784 = vunpack.c.h.b16 %v138
    %v785 = vunpack.c.l.b16 %v139
    %v786 = vunpack.c.h.b16 %v139
    %v787 = vunpack.c.l.b16 %v140
    %v788 = vunpack.c.h.b16 %v140
    %v789 = vunpack.c.l.b16 %v141
    %v790 = vunpack.c.h.b16 %v141
    %v791 = vunpack.c.l.b16 %v142
    %v792 = vunpack.c.h.b16 %v142
    %v793 = vunpack.c.l.b16 %v143
    %v794 = vunpack.c.h.b16 %v143
    %v795 = vunpack.c.l.b16 %v144
    %v796 = vunpack.c.h.b16 %v144
    %v797 = vunpack.c.l.b16 %v145
    %v798 = vunpack.c.h.b16 %v145
    %v799 = vunpack.c.l.b16 %v146
    %v800 = vunpack.c.h.b16 %v146
    %v801 = vunpack.c.l.b16 %v147
    %v802 = vunpack.c.h.b16 %v147
    %v803 = vunpack.c.l.b16 %v148
    %v804 = vunpack.c.h.b16 %v148
    %v805 = vunpack.c.l.b16 %v149
    %v806 = vunpack.c.h.b16 %v149
    %v807 = vunpack.c.l.b16 %v150
    %v808 = vunpack.c.h.b16 %v150
    %v809 = vunpack.c.l.b16 %v151
    %v810 = vunpack.c.h.b16 %v151
    %v811 = vunpack.c.l.b16 %v152
    %v812 = vunpack.c.h.b16 %v152
    %v813 = vunpack.c.l.b16 %v153
    %v814 = vunpack.c.h.b16 %v153
    %v815 = vunpack.c.l.b16 %v154
    %v816 = vunpack.c.h.b16 %v154
    %v817 = vunpack.c.l.b16 %v155
    %v818 = vunpack.c.h.b16 %v155
    %v819 = vunpack.c.l.b16 %v156
    %v820 = vunpack.c.h.b16 %v156
    %v821 = vunpack.c.l.b16 %v157
    %v822 = vunpack.c.h.b16 %v157
    %v823 = vunpack.c.l.b16 %v158
    %v824 = vunpack.c.h.b16 %v158
    %v825 = vunpack.c.l.b16 %v159
    %v826 = vunpack.c.h.b16 %v159
    %v827 = vunpack.c.l.b16 %v160
    %v828 = vunpack.c.h.b16 %v160
    %v829 = vunpack.c.l.b16 %v161
    %v830 = vunpack.c.h.b16 %v161
    %v831 = vunpack.c.l.b16 %v162
    %v832 = vunpack.c.h.b16 %v162
    %v833 = vunpack.c.l.b16 %v163
    %v834 = vunpack.c.h.b16 %v163
    %v835 = vunpack.c.l.b16 %v164
    %v836 = vunpack.c.h.b16 %v164
    %v837 = vunpack.c.l.b16 %v165
    %v838 = vunpack.c.h.b16 %v165
    %v839 = vunpack.c.l.b16 %v166
    %v840 = vunpack.c.h.b16 %v166
    %v841 = vunpack.c.l.b16 %v167
    %v842 = vunpack.c.h.b16 %v167
    %v843 = vunpack.c.l.b16 %v168
    %v844 = vunpack.c.h.b16 %v168
    %v845 = vunpack.c.l.b16 %v169
    %v846 = vunpack.c.h.b16 %v169
    %v847 = vunpack.c.l.b16 %v170
    %v848 = vunpack.c.h.b16 %v170
    %v849 = vunpack.c.l.b16 %v171
    %v850 = vunpack.c.h.b16 %v171
    %v851 = vunpack.c.l.b16 %v172
    %v852 = vunpack.c.h.b16 %v172
    %v853 = vunpack.c.l.b16 %v173
    %v854 = vunpack.c.h.b16 %v173
    %v855 = vunpack.c.l.b16 %v174
    %v856 = vunpack.c.h.b16 %v174
    %v857 = vunpack.c.l.b16 %v175
    %v858 = vunpack.c.h.b16 %v175
    %v859 = vunpack.c.l.b16 %v176
    %v860 = vunpack.c.h.b16 %v176
    %v861 = vunpack.c.l.b16 %v177
    %v862 = vunpack.c.h.b16 %v177
    %v863 = vunpack.c.l.b16 %v178
    %v864 = vunpack.c.h.b16 %v178
    %v865 = vunpack.c.l.b16 %v179
    %v866 = vunpack.c.h.b16 %v179
    %v867 = vunpack.c.l.b16 %v180
    %v868 = vunpack.c.h.b16 %v180
    %v869 = vunpack.c.l.b16 %v181
    %v870 = vunpack.c.h.b16 %v181
    %v871 = vunpack.c.l.b16 %v182
    %v872 = vunpack.c.h.b16 %v182
    %v873 = vunpack.c.l.b16 %v183
    %v874 = vunpack.c.h.b16 %v183
    %v875 = vunpack.c.l.b16 %v184
    %v876 = vunpack.c.h.b16 %v184
    %v877 = vunpack.c.l.b16 %v185
    %v878 = vunpack.c.h.b16 %v185
    %v879 = vunpack.c.l.b16 %v186
    %v880 = vunpack.c.h.b16 %v186
    %v881 = vunpack.c.l.b16 %v187
    %v882 = vunpack.c.h.b16 %v187
    %v883 = vunpack.c.l.b16 %v188
    %v884 = vunpack.c.h.b16 %v188
    %v885 = vunpack.c.l.b16 %v189
    %v886 = vunpack.c.h.b16 %v189
    %v887 = vunpack.c.l.b16 %v190
    %v888 = vunpack.c.h.b16 %v190
    %v889 = vunpack.c.l.b16 %v191
    %v890 = vunpack.c.h.b16 %v191
    %v891 = vunpack.c.l.b16 %v192
    %v892 = vunpack.c.h.b16 %v192
    %v893 = vunpack.c.l.b16 %v193
    %v894 = vunpack.c.h.b16 %v193
    %v895 = vunpack.c.l.b16 %v194
    %v896 = vunpack.c.h.b16 %v194
    %v897 = vunpack.c.l.b16 %v195
    %v898 = vunpack.c.h.b16 %v195
    %v899 = vunpack.c.l.b16 %v196
    %v900 = vunpack.c.h.b16 %v196
    %v901 = vunpack.c.l.b16 %v197
    %v902 = vunpack.c.h.b16 %v197
    %v903 = vunpack.c.l.b16 %v198
    %v904 = vunpack.c.h.b16 %v198
    %v905 = vunpack.c.l.b16 %v199
    %v906 = vunpack.c.h.b16 %v199
    %v907 = vunpack.c.l.b16 %v200
    %v908 = vunpack.c.h.b16 %v200
    %v909 = vunpack.c.l.b16 %v201
    %v910 = vunpack.c.h.b16 %v201
    %v911 = vunpack.c.l.b16 %v202
    %v912 = vunpack.c.h.b16 %v202
    %v913 = vunpack.c.l.b16 %v203
    %v914 = vunpack.c.h.b16 %v203
    %v915 = vunpack.c.l.b16 %v204
    %v916 = vunpack.c.h.b16 %v204
    %v917 = vunpack.c.l.b16 %v205
    %v918 = vunpack.c.h.b16 %v205
    %v919 = vunpack.c.l.b16 %v206
    %v920 = vunpack.c.h.b16 %v206
    %v921 = vunpack.c.l.b16 %v207
    %v922 = vunpack.c.h.b16 %v207
    %v923 = vunpack.c.l.b16 %v208
    %v924 = vunpack.c.h.b16 %v208
    %v925 = vunpack.c.l.b16 %v209
    %v926 = vunpack.c.h.b16 %v209
    %v927 = vunpack.c.l.b16 %v210
    %v928 = vunpack.c.h.b16 %v210
    %v929 = vunpack.c.l.b16 %v211
    %v930 = vunpack.c.h.b16 %v211
    %v931 = vunpack.c.l.b16 %v212
    %v932 = vunpack.c.h.b16 %v212
    %v933 = vunpack.c.l.b16 %v213
    %v934 = vunpack.c.h.b16 %v213
    %v935 = vunpack.c.l.b16 %v214
    %v936 = vunpack.c.h.b16 %v214
    %v937 = vunpack.c.l.b16 %v215
    %v938 = vunpack.c.h.b16 %v215
    %v939 = vunpack.c.l.b16 %v216
    %v940 = vunpack.c.h.b16 %v216
    %v941 = vunpack.c.l.b16 %v217
    %v942 = vunpack.c.h.b16 %v217
    %v943 = vunpack.c.l.b16 %v218
    %v944 = vunpack.c.h.b16 %v218
    %v945 = vunpack.c.l.b16 %v219
    %v946 = vunpack.c.h.b16 %v219
    %v947 = vunpack.c.l.b16 %v220
    %v948 = vunpack.c.h.b16 %v220
    %v949 = vunpack.c.l.b16 %v221
    %v950 = vunpack.c.h.b16 %v221
    %v951 = vunpack.c.l.b16 %v222
    %v952 = vunpack.c.h.b16 %v222
    %v953 = vunpack.c.l.b16 %v223
    %v954 = vunpack.c.h.b16 %v223
    %v955 = vunpack.c.l.b16 %v224
    %v956 = vunpack.c.h.b16 %v224
    %v957 = vunpack.c.l.b16 %v225
    %v958 = vunpack.c.h.b16 %v225
    %v959 = vunpack.c.l.b16 %v226
    %v960 = vunpack.c.h.b16 %v226
    %v961 = vunpack.c.l.b16 %v227
    %v962 = vunpack.c.h.b16 %v227
    %v963 = vunpack.c.l.b16 %v228
    %v964 = vunpack.c.h.b16 %v228
    %v965 = vunpack.c.l.b16 %v229
    %v966 = vunpack.c.h.b16 %v229
    %v967 = vunpack.c.l.b16 %v230
    %v968 = vunpack.c.h.b16 %v230
    %v969 = vunpack.c.l.b16 %v231
    %v970 = vunpack.c.h.b16 %v231
    %v971 = vunpack.c.l.b16 %v232
    %v972 = vunpack.c.h.b16 %v232
    %v973 = vunpack.c.l.b16 %v233
    %v974 = vunpack.c.h.b16 %v233
    %v975 = vunpack.c.l.b16 %v234
    %v976 = vunpack.c.h.b16 %v234
    %v977 = vunpack.c.l.b16 %v235
    %v978 = vunpack.c.h.b16 %v235
    %v979 = vunpack.c.l.b16 %v236
    %v980 = vunpack.c.h.b16 %v236
    %v981 = vunpack.c.l.b16 %v237
    %v982 = vunpack.c.h.b16 %v237
    %v983 = vunpack.c.l.b16 %v238
    %v984 = vunpack.c.h.b16 %v238
    %v985 = vunpack.c.l.b16 %v239
    %v986 = vunpack.c.h.b16 %v239
    %v987 = vunpack.c.l.b16 %v240
    %v988 = vunpack.c.h.b16 %v240
    %v989 = vunpack.c.l.b16 %v241
    %v990 = vunpack.c.h.b16 %v241
    %v991 = vunpack.c.l.b16 %v242
    %v992 = vunpack.c.h.b16 %v242
    %v993 = vunpack.c.l.b16 %v243
    %v994 = vunpack.c.h.b16 %v243
    %v995 = vunpack.c.l.b16 %v244
    %v996 = vunpack.c.h.b16 %v244
    %v997 = vunpack.c.l.b16 %v245
    %v998 = vunpack.c.h.b16 %v245
    %v999 = vunpack.c.l.b16 %v246
    %v1000 = vunpack.c.h.b16 %v246
    %v1001 = vunpack.c.l.b16 %v247
    %v1002 = vunpack.c.h.b16 %v247
    %v1003 = vunpack.c.l.b16 %v248
    %v1004 = vunpack.c.h.b16 %v248
    %v1005 = vunpack.c.l.b16 %v249
    %v1006 = vunpack.c.h.b16 %v249
    %v1007 = vunpack.c.l.b16 %v250
    %v1008 = vunpack.c.h.b16 %v250
    %v1009 = vunpack.c.l.b16 %v251
    %v1010 = vunpack.c.h.b16 %v251
    %v1011 = vunpack.c.l.b16 %v252
    %v1012 = vunpack.c.h.b16 %v252
    %v1013 = vunpack.c.l.b16 %v253
    %v1014 = vunpack.c.h.b16 %v253
    %v1015 = vunpack.c.l.b16 %v254
    %v1016 = vunpack.c.h.b16 %v254
    %v1017 = vunpack.c.l.b16 %v255
    %v1018 = vunpack.c.h.b16 %v255
    %v1019 = vunpack.c.l.b16 %v256
    %v1020 = vunpack.c.h.b16 %v256
    %v1021 = vunpack.c.l.b16 %v257
    %v1022 = vunpack.c.h.b16 %v257
    %v1023 = vunpack.c.l.b16 %v258
    %v1024 = vunpack.c.h.b16 %v258
    %v1025 = vunpack.c.l.b16 %v259
    %v1026 = vunpack.c.h.b16 %v259
    %v1027 = vunpack.c.l.b16 %v260
    %v1028 = vunpack.c.h.b16 %v260
    %v1029 = vunpack.c.l.b16 %v261
    %v1030 = vunpack.c.h.b16 %v261
    %v1031 = vunpack.c.l.b16 %v262
    %v1032 = vunpack.c.h.b16 %v262
    %v1033 = vunpack.c.l.b16 %v263
    %v1034 = vunpack.c.h.b16 %v263
    %v1035 = vunpack.c.l.b16 %v264
    %v1036 = vunpack.c.h.b16 %v264
    %v1037 = vunpack.c.l.b16 %v265
    %v1038 = vunpack.c.h.b16 %v265
    %v1039 = vunpack.c.l.b16 %v266
    %v1040 = vunpack.c.h.b16 %v266
    %v1041 = vunpack.c.l.b16 %v267
    %v1042 = vunpack.c.h.b16 %v267
    %v1043 = vunpack.c.l.b16 %v268
    %v1044 = vunpack.c.h.b16 %v268
    %v1045 = vunpack.c.l.b16 %v269
    %v1046 = vunpack.c.h.b16 %v269
    %v1047 = vunpack.c.l.b16 %v270
    %v1048 = vunpack.c.h.b16 %v270
    %v1049 = vunpack.c.l.b16 %v271
    %v1050 = vunpack.c.h.b16 %v271
    %v1051 = vunpack.c.l.b16 %v272
    %v1052 = vunpack.c.h.b16 %v272
    %v1053 = vunpack.c.l.b16 %v273
    %v1054 = vunpack.c.h.b16 %v273
    %v1055 = vunpack.c.l.b16 %v274
    %v1056 = vunpack.c.h.b16 %v274
    %v1057 = vunpack.c.l.b16 %v275
    %v1058 = vunpack.c.h.b16 %v275
    %v1059 = vunpack.c.l.b16 %v276
    %v1060 = vunpack.c.h.b16 %v276
    %v1061 = vunpack.c.l.b16 %v277
    %v1062 = vunpack.c.h.b16 %v277
    %v1063 = vunpack.c.l.b16 %v278
    %v1064 = vunpack.c.h.b16 %v278
    %v1065 = vunpack.c.l.b16 %v279
    %v1066 = vunpack.c.h.b16 %v279
    %v1067 = vunpack.c.l.b16 %v280
    %v1068 = vunpack.c.h.b16 %v280
    %v1069 = vunpack.c.l.b16 %v281
    %v1070 = vunpack.c.h.b16 %v281
    %v1071 = vunpack.c.l.b16 %v282
    %v1072 = vunpack.c.h.b16 %v282
    %v1073 = vunpack.c.l.b16 %v283
    %v1074 = vunpack.c.h.b16 %v283
    %v1075 = vunpack.c.l.b16 %v284
    %v1076 = vunpack.c.h.b16 %v284
    %v1077 = vunpack.c.l.b16 %v285
    %v1078 = vunpack.c.h.b16 %v285
    %v1079 = vunpack.c.l.b16 %v286
    %v1080 = vunpack.c.h.b16 %v286
    %v1081 = vunpack.c.l.b16 %v287
    %v1082 = vunpack.c.h.b16 %v287
    %v1083 = vunpack.c.l.b16 %v288
    %v1084 = vunpack.c.h.b16 %v288
    %v1085 = vunpack.c.l.b16 %v289
    %v1086 = vunpack.c.h.b16 %v289
    %v1087 = vunpack.c.l.b16 %v290
    %v1088 = vunpack.c.h.b16 %v290
    %v1089 = vunpack.c.l.b16 %v291
    %v1090 = vunpack.c.h.b16 %v291
    %v1091 = vunpack.c.l.b16 %v292
    %v1092 = vunpack.c.h.b16 %v292
    %v1093 = vunpack.c.l.b16 %v293
    %v1094 = vunpack.c.h.b16 %v293
    %v1095 = vunpack.c.l.b16 %v294
    %v1096 = vunpack.c.h.b16 %v294
    %v1097 = vunpack.c.l.b16 %v295
    %v1098 = vunpack.c.h.b16 %v295
    %v1099 = vunpack.c.l.b16 %v296
    %v1100 = vunpack.c.h.b16 %v296
    %v1101 = vunpack.c.l.b16 %v297
    %v1102 = vunpack.c.h.b16 %v297
    %v1103 = vunpack.c.l.b16 %v298
    %v1104 = vunpack.c.h.b16 %v298
    %v1105 = vunpack.c.l.b16 %v299
    %v1106 = vunpack.c.h.b16 %v299
    %v1107 = vunpack.c.l.b16 %v300
    %v1108 = vunpack.c.h.b16 %v300
    %v1109 = vunpack.c.l.b16 %v301
    %v1110 = vunpack.c.h.b16 %v301
    %v1111 = vunpack.c.l.b16 %v302
    %v1112 = vunpack.c.h.b16 %v302
    %v1113 = vunpack.c.l.b16 %v303
    %v1114 = vunpack.c.h.b16 %v303
    %v1115 = vunpack.c.l.b16 %v304
    %v1116 = vunpack.c.h.b16 %v304
    %v1117 = vunpack.c.l.b16 %v305
    %v1118 = vunpack.c.h.b16 %v305
    %v1119 = vunpack.c.l.b16 %v306
    %v1120 = vunpack.c.h.b16 %v306
    %v1121 = vunpack.c.l.b16 %v307
    %v1122 = vunpack.c.h.b16 %v307
    %v1123 = vunpack.c.l.b16 %v308
    %v1124 = vunpack.c.h.b16 %v308
    %v1125 = vunpack.c.l.b16 %v309
    %v1126 = vunpack.c.h.b16 %v309
    %v1127 = vunpack.c.l.b16 %v310
    %v1128 = vunpack.c.h.b16 %v310
    %v1129 = vpack.c.b16 %v741, %v737
    %v1130 = vpack.c.b16 %v742, %v738
    %v1131 = vpack.c.b16 %v743, %v739
    %v1132 = vpack.c.b16 %v744, %v740
    %v1133 = vpack.c.b16 %v749, %v745
    %v1134 = vpack.c.b16 %v750, %v746
    %v1135 = vpack.c.b16 %v751, %v747
    %v1136 = vpack.c.b16 %v752, %v748
    %v1137 = vpack.c.b16 %v757, %v753
    %v1138 = vpack.c.b16 %v758, %v754
    %v1139 = vpack.c.b16 %v759, %v755
    %v1140 = vpack.c.b16 %v760, %v756
    %v1141 = vpack.c.b16 %v765, %v761
    %v1142 = vpack.c.b16 %v766, %v762
    %v1143 = vpack.c.b16 %v767, %v763
    %v1144 = vpack.c.b16 %v768, %v764
    %v1145 = vpack.c.b16 %v773, %v769
    %v1146 = vpack.c.b16 %v774, %v770
    %v1147 = vpack.c.b16 %v775, %v771
    %v1148 = vpack.c.b16 %v776, %v772
    %v1149 = vpack.c.b16 %v781, %v777
    %v1150 = vpack.c.b16 %v782, %v778
    %v1151 = vpack.c.b16 %v783, %v779
    %v1152 = vpack.c.b16 %v784, %v780
    %v1153 = vpack.c.b16 %v789, %v785
    %v1154 = vpack.c.b16 %v790, %v786
    %v1155 = vpack.c.b16 %v791, %v787
    %v1156 = vpack.c.b16 %v792, %v788
    %v1157 = vpack.c.b16 %v797, %v793
    %v1158 = vpack.c.b16 %v798, %v794
    %v1159 = vpack.c.b16 %v799, %v795
    %v1160 = vpack.c.b16 %v800, %v796
    %v1161 = vpack.c.b16 %v805, %v801
    %v1162 = vpack.c.b16 %v806, %v802
    %v1163 = vpack.c.b16 %v807, %v803
    %v1164 = vpack.c.b16 %v808, %v804
    %v1165 = vpack.c.b16 %v813, %v809
    %v1166 = vpack.c.b16 %v814, %v810
    %v1167 = vpack.c.b16 %v815, %v811
    %v1168 = vpack.c.b16 %v816, %v812
    %v1169 = vpack.c.b16 %v821, %v817
    %v1170 = vpack.c.b16 %v822, %v818
    %v1171 = vpack.c.b16 %v823, %v819
    %v1172 = vpack.c.b16 %v824, %v820
    %v1173 = vpack.c.b16 %v829, %v825
    %v1174 = vpack.c.b16 %v830, %v826
    %v1175 = vpack.c.b16 %v831, %v827
    %v1176 = vpack.c.b16 %v832, %v828
    %v1177 = vpack.c.b16 %v837, %v833
    %v1178 = vpack.c.b16 %v838, %v834
    %v1179 = vpack.c.b16 %v839, %v835
    %v1180 = vpack.c.b16 %v840, %v836
    %v1181 = vpack.c.b16 %v845, %v841
    %v1182 = vpack.c.b16 %v846, %v842
    %v1183 = vpack.c.b16 %v847, %v843
    %v1184 = vpack.c.b16 %v848, %v844
    %v1185 = vpack.c.b16 %v853, %v849
    %v1186 = vpack.c.b16 %v854, %v850
    %v1187 = vpack.c.b16 %v855, %v851
    %v1188 = vpack.c.b16 %v856, %v852
    %v1189 = vpack.c.b16 %v861, %v857
    %v1190 = vpack.c.b16 %v862, %v858
    %v1191 = vpack.c.b16 %v863, %v859
    %v1192 = vpack.c.b16 %v864, %v860
    %v1193 = vpack.c.b16 %v869, %v865
    %v1194 = vpack.c.b16 %v870, %v866
    %v1195 = vpack.c.b16 %v871, %v867
    %v1196 = vpack.c.b16 %v872, %v868
    %v1197 = vpack.c.b16 %v877, %v873
    %v1198 = vpack.c.b16 %v878, %v874
    %v1199 = vpack.c.b16 %v879, %v875
    %v1200 = vpack.c.b16 %v880, %v876
    %v1201 = vpack.c.b16 %v885, %v881
    %v1202 = vpack.c.b16 %v886, %v882
    %v1203 = vpack.c.b16 %v887, %v883
    %v1204 = vpack.c.b16 %v888, %v884
    %v1205 = vpack.c.b16 %v893, %v889
    %v1206 = vpack.c.b16 %v894, %v890
    %v1207 = vpack.c.b16 %v895, %v891
    %v1208 = vpack.c.b16 %v896, %v892
    %v1209 = vpack.c.b16 %v901, %v897
    %v1210 = vpack.c.b16 %v902, %v898
    %v1211 = vpack.c.b16 %v903, %v899
    %v1212 = vpack.c.b16 %v904, %v900
    %v1213 = vpack.c.b16 %v909, %v905
    %v1214 = vpack.c.b16 %v910, %v906
    %v1215 = vpack.c.b16 %v911, %v907
    %v1216 = vpack.c.b16 %v912, %v908
    %v1217 = vpack.c.b16 %v917, %v913
    %v1218 = vpack.c.b16 %v918, %v914
    %v1219 = vpack.c.b16 %v919, %v915
    %v1220 = vpack.c.b16 %v920, %v916
    %v1221 = vpack.c.b16 %v925, %v921
    %v1222 = vpack.c.b16 %v926, %v922
    %v1223 = vpack.c.b16 %v927, %v923
    %v1224 = vpack.c.b16 %v928, %v924
    %v1225 = vpack.c.b16 %v933, %v929
    %v1226 = vpack.c.b16 %v934, %v930
    %v1227 = vpack.c.b16 %v935, %v931
    %v1228 = vpack.c.b16 %v936, %v932
    %v1229 = vpack.c.b16 %v941, %v937
    %v1230 = vpack.c.b16 %v942, %v938
    %v1231 = vpack.c.b16 %v943, %v939
    %v1232 = vpack.c.b16 %v944, %v940
    %v1233 = vpack.c.b16 %v949, %v945
    %v1234 = vpack.c.b16 %v950, %v946
    %v1235 = vpack.c.b16 %v951, %v947
    %v1236 = vpack.c.b16 %v952, %v948
    %v1237 = vpack.c.b16 %v957, %v953
    %v1238 = vpack.c.b16 %v958, %v954
    %v1239 = vpack.c.b16 %v959, %v955
    %v1240 = vpack.c.b16 %v960, %v956
    %v1241 = vpack.c.b16 %v965, %v961
    %v1242 = vpack.c.b16 %v966, %v962
    %v1243 = vpack.c.b16 %v967, %v963
    %v1244 = vpack.c.b16 %v968, %v964
    %v1245 = vpack.c.b16 %v973, %v969
    %v1246 = vpack.c.b16 %v974, %v970
    %v1247 = vpack.c.b16 %v975, %v971
    %v1248 = vpack.c.b16 %v976, %v972
    %v1249 = vpack.c.b16 %v981, %v977
    %v1250 = vpack.c.b16 %v982, %v978
    %v1251 = vpack.c.b16 %v983, %v979
    %v1252 = vpack.c.b16 %v984, %v980
    %v1253 = vpack.c.b16 %v989, %v985
    %v1254 = vpack.c.b16 %v990, %v986
    %v1255 = vpack.c.b16 %v991, %v987
    %v1256 = vpack.c.b16 %v992, %v988
    %v1257 = vpack.c.b16 %v997, %v993
    %v1258 = vpack.c.b16 %v998, %v994
    %v1259 = vpack.c.b16 %v999, %v995
    %v1260 = vpack.c.b16 %v1000, %v996
    %v1261 = vpack.c.b16 %v1005, %v1001
    %v1262 = vpack.c.b16 %v1006, %v1002
    %v1263 = vpack.c.b16 %v1007, %v1003
    %v1264 = vpack.c.b16 %v1008, %v1004
    %v1265 = vpack.c.b16 %v1013, %v1009
    %v1266 = vpack.c.b16 %v1014, %v1010
    %v1267 = vpack.c.b16 %v1015, %v1011
    %v1268 = vpack.c.b16 %v1016, %v1012
    %v1269 = vpack.c.b16 %v1021, %v1017
    %v1270 = vpack.c.b16 %v1022, %v1018
    %v1271 = vpack.c.b16 %v1023, %v1019
    %v1272 = vpack.c.b16 %v1024, %v1020
    %v1273 = vpack.c.b16 %v1029, %v1025
    %v1274 = vpack.c.b16 %v1030, %v1026
    %v1275 = vpack.c.b16 %v1031, %v1027
    %v1276 = vpack.c.b16 %v1032, %v1028
    %v1277 = vpack.c.b16 %v1037, %v1033
    %v1278 = vpack.c.b16 %v1038, %v1034
    %v1279 = vpack.c.b16 %v1039, %v1035
    %v1280 = vpack.c.b16 %v1040, %v1036
    %v1281 = vpack.c.b16 %v1045, %v1041
    %v1282 = vpack.c.b16 %v1046, %v1042
    %v1283 = vpack.c.b16 %v1047, %v1043
    %v1284 = vpack.c.b16 %v1048, %v1044
    %v1285 = vpack.c.b16 %v1053, %v1049
    %v1286 = vpack.c.b16 %v1054, %v1050
    %v1287 = vpack.c.b16 %v1055, %v1051
    %v1288 = vpack.c.b16 %v1056, %v1052
    %v1289 = vpack.c.b16 %v1061, %v1057
    %v1290 = vpack.c.b16 %v1062, %v1058
    %v1291 = vpack.c.b16 %v1063, %v1059
    %v1292 = vpack.c.b16 %v1064, %v1060
    %v1293 = vpack.c.b16 %v1069, %v1065
    %v1294 = vpack.c.b16 %v1070, %v1066
    %v1295 = vpack.c.b16 %v1071, %v1067
    %v1296 = vpack.c.b16 %v1072, %v1068
    %v1297 = vpack.c.b16 %v1077, %v1073
    %v1298 = vpack.c.b16 %v1078, %v1074
    %v1299 = vpack.c.b16 %v1079, %v1075
    %v1300 = vpack.c.b16 %v1080, %v1076
    %v1301 = vpack.c.b16 %v1085, %v1081
    %v1302 = vpack.c.b16 %v1086, %v1082
    %v1303 = vpack.c.b16 %v1087, %v1083
    %v1304 = vpack.c.b16 %v1088, %v1084
    %v1305 = vpack.c.b16 %v1093, %v1089
    %v1306 = vpack.c.b16 %v1094, %v1090
    %v1307 = vpack.c.b16 %v1095, %v1091
    %v1308 = vpack.c.b16 %v1096, %v1092
    %v1309 = vpack.c.b16 %v1101, %v1097
    %v1310 = vpack.c.b16 %v1102, %v1098
    %v1311 = vpack.c.b16 %v1103, %v1099
    %v1312 = vpack.c.b16 %v1104, %v1100
    %v1313 = vpack.c.b16 %v1109, %v1105
    %v1314 = vpack.c.b16 %v1110, %v1106
    %v1315 = vpack.c.b16 %v1111, %v1107
    %v1316 = vpack.c.b16 %v1112, %v1108
    %v1317 = vpack.c.b16 %v1117, %v1113
    %v1318 = vpack.c.b16 %v1118, %v1114
    %v1319 = vpack.c.b16 %v1119, %v1115
    %v1320 = vpack.c.b16 %v1120, %v1116
    %v1321 = vpack.c.b16 %v1125, %v1121
    %v1322 = vpack.c.b16 %v1126, %v1122
    %v1323 = vpack.c.b16 %v1127, %v1123
    %v1324 = vpack.c.b16 %v1128, %v1124
    %vm1521 = vcmask 130048
    %v1523 = vsel %vm1521, %v519, 0
    %1525 = vmatprep.subr.bf16.mxu0 %v1130
    %1526 = vmatpush1.bf16.msra.mxu0 %v1129
    %1527 = vmatprep.subr.bf16.mxu0 %v1134
    %1528 = vmatpush1.bf16.msra.mxu0 %v1133
    %1529 = vmatprep.subr.bf16.mxu0 %v1138
    %1530 = vmatpush1.bf16.msra.mxu0 %v1137
    %1531 = vmatprep.subr.bf16.mxu0 %v1142
    %1532 = vmatpush1.bf16.msra.mxu0 %v1141
    %1533 = vmatprep.subr.bf16.mxu0 %v1146
    %1534 = vmatpush1.bf16.msra.mxu0 %v1145
    %1535 = vmatprep.subr.bf16.mxu0 %v1150
    %1536 = vmatpush1.bf16.msra.mxu0 %v1149
    %1537 = vmatprep.subr.bf16.mxu0 %v1154
    %1538 = vmatpush1.bf16.msra.mxu0 %v1153
    %1539 = vmatprep.subr.bf16.mxu0 %v1158
    %1540 = vmatpush1.bf16.msra.mxu0 %v1157
    %1541 = vmatprep.subr.bf16.mxu0 %v1162
    %1542 = vmatpush1.bf16.msra.mxu0 %v1161
    %1543 = vmatprep.subr.bf16.mxu0 %v1166
    %1544 = vmatpush1.bf16.msra.mxu0 %v1165
    %1545 = vmatprep.subr.bf16.mxu0 %v1170
    %1546 = vmatpush1.bf16.msra.mxu0 %v1169
    %1547 = vmatprep.subr.bf16.mxu0 %v1174
    %1548 = vmatpush1.bf16.msra.mxu0 %v1173
    %1549 = vmatprep.subr.bf16.mxu0 %v1178
    %1550 = vmatpush1.bf16.msra.mxu0 %v1177
    %1551 = vmatprep.subr.bf16.mxu0 %v1182
    %1552 = vmatpush1.bf16.msra.mxu0 %v1181
    %1553 = vmatprep.subr.bf16.mxu0 %v1186
    %1554 = vmatpush1.bf16.msra.mxu0 %v1185
    %1555 = vmatprep.subr.bf16.mxu0 %v1190
    %1556 = vmatpush1.bf16.msra.mxu0 %v1189
    %1557 = vmatprep.mubr.bf16.mxu0 %v514
    %1558 = vmatmul.mubr.bf16.gmra.mrb[0].mxu0 %v513
    %v1559 = vpop.f32.mrb[0].mxu0
    %v1560 = vadd.f32 %v524, %v1559
    %v1561 = vpop.f32.mrb[0].mxu0
    %v1562 = vadd.f32 %v528, %v1561
    %v1563 = vpop.f32.mrb[0].mxu0
    %v1564 = vpop.f32.mrb[0].mxu0
    %1565 = vdwg.mxu0
    %1566 = vmatprep.subr.bf16.mxu0 %v1194
    %1567 = vmatpush1.bf16.msra.mxu0 %v1193
    %1568 = vmatprep.subr.bf16.mxu0 %v1198
    %1569 = vmatpush1.bf16.msra.mxu0 %v1197
    %1570 = vmatprep.subr.bf16.mxu0 %v1202
    %1571 = vmatpush1.bf16.msra.mxu0 %v1201
    %1572 = vmatprep.subr.bf16.mxu0 %v1206
    %1573 = vmatpush1.bf16.msra.mxu0 %v1205
    %1574 = vmatprep.subr.bf16.mxu0 %v1210
    %1575 = vmatpush1.bf16.msra.mxu0 %v1209
    %1576 = vmatprep.subr.bf16.mxu0 %v1214
    %1577 = vmatpush1.bf16.msra.mxu0 %v1213
    %1578 = vmatprep.subr.bf16.mxu0 %v1218
    %1579 = vmatpush1.bf16.msra.mxu0 %v1217
    %1580 = vmatprep.subr.bf16.mxu0 %v1222
    %1581 = vmatpush1.bf16.msra.mxu0 %v1221
    %1582 = vmatprep.subr.bf16.mxu0 %v1226
    %1583 = vmatpush1.bf16.msra.mxu0 %v1225
    %1584 = vmatprep.subr.bf16.mxu0 %v1230
    %1585 = vmatpush1.bf16.msra.mxu0 %v1229
    %1586 = vmatprep.subr.bf16.mxu0 %v1234
    %1587 = vmatpush1.bf16.msra.mxu0 %v1233
    %1588 = vmatprep.subr.bf16.mxu0 %v1238
    %1589 = vmatpush1.bf16.msra.mxu0 %v1237
    %1590 = vmatprep.subr.bf16.mxu0 %v1242
    %1591 = vmatpush1.bf16.msra.mxu0 %v1241
    %1592 = vmatprep.subr.bf16.mxu0 %v1246
    %1593 = vmatpush1.bf16.msra.mxu0 %v1245
    %1594 = vmatprep.subr.bf16.mxu0 %v1250
    %1595 = vmatpush1.bf16.msra.mxu0 %v1249
    %1596 = vmatprep.subr.bf16.mxu0 %v1254
    %1597 = vmatpush1.bf16.msra.mxu0 %v1253
    %1598 = vmatprep.mubr.bf16.mxu0 %v516
    %1599 = vmatmul.mubr.bf16.gmra.mrb[0].mxu0 %v515
    %v1600 = vpop.f32.mrb[0].mxu0
    %v1601 = vadd.f32 %v1560, %v1600
    %v1602 = vpop.f32.mrb[0].mxu0
    %v1603 = vadd.f32 %v1562, %v1602
    %v1604 = vpop.f32.mrb[0].mxu0
    %v1605 = vpop.f32.mrb[0].mxu0
    %1606 = vdwg.mxu0
    %1607 = vmatprep.subr.bf16.mxu0 %v1258
    %1608 = vmatpush1.bf16.msra.mxu0 %v1257
    %1609 = vmatprep.subr.bf16.mxu0 %v1262
    %1610 = vmatpush1.bf16.msra.mxu0 %v1261
    %1611 = vmatprep.subr.bf16.mxu0 %v1266
    %1612 = vmatpush1.bf16.msra.mxu0 %v1265
    %1613 = vmatprep.subr.bf16.mxu0 %v1270
    %1614 = vmatpush1.bf16.msra.mxu0 %v1269
    %1615 = vmatprep.subr.bf16.mxu0 %v1274
    %1616 = vmatpush1.bf16.msra.mxu0 %v1273
    %1617 = vmatprep.subr.bf16.mxu0 %v1278
    %1618 = vmatpush1.bf16.msra.mxu0 %v1277
    %1619 = vmatprep.subr.bf16.mxu0 %v1282
    %1620 = vmatpush1.bf16.msra.mxu0 %v1281
    %1621 = vmatprep.subr.bf16.mxu0 %v1286
    %1622 = vmatpush1.bf16.msra.mxu0 %v1285
    %1623 = vmatprep.subr.bf16.mxu0 %v1290
    %1624 = vmatpush1.bf16.msra.mxu0 %v1289
    %1625 = vmatprep.subr.bf16.mxu0 %v1294
    %1626 = vmatpush1.bf16.msra.mxu0 %v1293
    %1627 = vmatprep.subr.bf16.mxu0 %v1298
    %1628 = vmatpush1.bf16.msra.mxu0 %v1297
    %1629 = vmatprep.subr.bf16.mxu0 %v1302
    %1630 = vmatpush1.bf16.msra.mxu0 %v1301
    %1631 = vmatprep.subr.bf16.mxu0 %v1306
    %1632 = vmatpush1.bf16.msra.mxu0 %v1305
    %1633 = vmatprep.subr.bf16.mxu0 %v1310
    %1634 = vmatpush1.bf16.msra.mxu0 %v1309
    %1635 = vmatprep.subr.bf16.mxu0 %v1314
    %1636 = vmatpush1.bf16.msra.mxu0 %v1313
    %1637 = vmatprep.subr.bf16.mxu0 %v1318
    %1638 = vmatpush1.bf16.msra.mxu0 %v1317
    %1639 = vmatprep.mubr.bf16.mxu0 %v518
    %1640 = vmatmul.mubr.bf16.gmra.mrb[0].mxu0 %v517
    %v1641 = vpop.f32.mrb[0].mxu0
    %v1642 = vadd.f32 %v1601, %v1641
    %v1643 = vpop.f32.mrb[0].mxu0
    %v1644 = vadd.f32 %v1603, %v1643
    %v1645 = vpop.f32.mrb[0].mxu0
    %v1646 = vpop.f32.mrb[0].mxu0
    %1647 = vdwg.mxu0
    %1648 = vmatprep.subr.bf16.mxu0 %v1322
    %1649 = vmatpush1.bf16.msra.mxu0 %v1321
    %1650 = vmatprep.subr.bf16.mxu0 0
    %1651 = vmatpush1.bf16.msra.mxu0 0
    %1652 = vmatprep.subr.bf16.mxu0 0
    %1653 = vmatpush1.bf16.msra.mxu0 0
    %1654 = vmatprep.subr.bf16.mxu0 0
    %1655 = vmatpush1.bf16.msra.mxu0 0
    %1656 = vmatprep.subr.bf16.mxu0 0
    %1657 = vmatpush1.bf16.msra.mxu0 0
    %1658 = vmatprep.subr.bf16.mxu0 0
    %1659 = vmatpush1.bf16.msra.mxu0 0
    %1660 = vmatprep.subr.bf16.mxu0 0
    %1661 = vmatpush1.bf16.msra.mxu0 0
    %1662 = vmatprep.subr.bf16.mxu0 0
    %1663 = vmatpush1.bf16.msra.mxu0 0
    %1664 = vmatprep.subr.bf16.mxu0 0
    %1665 = vmatpush1.bf16.msra.mxu0 0
    %1666 = vmatprep.subr.bf16.mxu0 0
    %1667 = vmatpush1.bf16.msra.mxu0 0
    %1668 = vmatprep.subr.bf16.mxu0 0
    %1669 = vmatpush1.bf16.msra.mxu0 0
    %1670 = vmatprep.subr.bf16.mxu0 0
    %1671 = vmatpush1.bf16.msra.mxu0 0
    %1672 = vmatprep.subr.bf16.mxu0 0
    %1673 = vmatpush1.bf16.msra.mxu0 0
    %1674 = vmatprep.subr.bf16.mxu0 0
    %1675 = vmatpush1.bf16.msra.mxu0 0
    %1676 = vmatprep.subr.bf16.mxu0 0
    %1677 = vmatpush1.bf16.msra.mxu0 0
    %1678 = vmatprep.subr.bf16.mxu0 0
    %1679 = vmatpush1.bf16.msra.mxu0 0
    %1680 = vmatprep.mubr.bf16.mxu0 0
    %1681 = vmatmul.mubr.bf16.gmra.mrb[0].mxu0 %v1523
    %v1682 = vpop.f32.mrb[0].mxu0
    %v1683 = vadd.f32 %v1642, %v1682
    %v1684 = vpop.f32.mrb[0].mxu0
    %v1685 = vadd.f32 %v1644, %v1684
    %v1686 = vpop.f32.mrb[0].mxu0
    %v1687 = vpop.f32.mrb[0].mxu0
    %1688 = vdwg.mxu0
    %1689 = vmatprep.subr.bf16.mxu0 %v1132
    %1690 = vmatpush1.bf16.msra.mxu0 %v1131
    %1691 = vmatprep.subr.bf16.mxu0 %v1136
    %1692 = vmatpush1.bf16.msra.mxu0 %v1135
    %1693 = vmatprep.subr.bf16.mxu0 %v1140
    %1694 = vmatpush1.bf16.msra.mxu0 %v1139
    %1695 = vmatprep.subr.bf16.mxu0 %v1144
    %1696 = vmatpush1.bf16.msra.mxu0 %v1143
    %1697 = vmatprep.subr.bf16.mxu0 %v1148
    %1698 = vmatpush1.bf16.msra.mxu0 %v1147
    %1699 = vmatprep.subr.bf16.mxu0 %v1152
    %1700 = vmatpush1.bf16.msra.mxu0 %v1151
    %1701 = vmatprep.subr.bf16.mxu0 %v1156
    %1702 = vmatpush1.bf16.msra.mxu0 %v1155
    %1703 = vmatprep.subr.bf16.mxu0 %v1160
    %1704 = vmatpush1.bf16.msra.mxu0 %v1159
    %1705 = vmatprep.subr.bf16.mxu0 %v1164
    %1706 = vmatpush1.bf16.msra.mxu0 %v1163
    %1707 = vmatprep.subr.bf16.mxu0 %v1168
    %1708 = vmatpush1.bf16.msra.mxu0 %v1167
    %1709 = vmatprep.subr.bf16.mxu0 %v1172
    %1710 = vmatpush1.bf16.msra.mxu0 %v1171
    %1711 = vmatprep.subr.bf16.mxu0 %v1176
    %1712 = vmatpush1.bf16.msra.mxu0 %v1175
    %1713 = vmatprep.subr.bf16.mxu0 %v1180
    %1714 = vmatpush1.bf16.msra.mxu0 %v1179
    %1715 = vmatprep.subr.bf16.mxu0 %v1184
    %1716 = vmatpush1.bf16.msra.mxu0 %v1183
    %1717 = vmatprep.subr.bf16.mxu0 %v1188
    %1718 = vmatpush1.bf16.msra.mxu0 %v1187
    %1719 = vmatprep.subr.bf16.mxu0 %v1192
    %1720 = vmatpush1.bf16.msra.mxu0 %v1191
    %1721 = vmatprep.mubr.bf16.mxu0 %v514
    %1722 = vmatmul.mubr.bf16.gmra.mrb[0].mxu0 %v513
    %v1723 = vpop.f32.mrb[0].mxu0
    %v1724 = vadd.f32 %v532, %v1723
    %v1725 = vpop.f32.mrb[0].mxu0
    %v1726 = vadd.f32 %v536, %v1725
    %v1727 = vpop.f32.mrb[0].mxu0
    %v1728 = vpop.f32.mrb[0].mxu0
    %1729 = vdwg.mxu0
    %1730 = vmatprep.subr.bf16.mxu0 %v1196
    %1731 = vmatpush1.bf16.msra.mxu0 %v1195
    %1732 = vmatprep.subr.bf16.mxu0 %v1200
    %1733 = vmatpush1.bf16.msra.mxu0 %v1199
    %1734 = vmatprep.subr.bf16.mxu0 %v1204
    %1735 = vmatpush1.bf16.msra.mxu0 %v1203
    %1736 = vmatprep.subr.bf16.mxu0 %v1208
    %1737 = vmatpush1.bf16.msra.mxu0 %v1207
    %1738 = vmatprep.subr.bf16.mxu0 %v1212
    %1739 = vmatpush1.bf16.msra.mxu0 %v1211
    %1740 = vmatprep.subr.bf16.mxu0 %v1216
    %1741 = vmatpush1.bf16.msra.mxu0 %v1215
    %1742 = vmatprep.subr.bf16.mxu0 %v1220
    %1743 = vmatpush1.bf16.msra.mxu0 %v1219
    %1744 = vmatprep.subr.bf16.mxu0 %v1224
    %1745 = vmatpush1.bf16.msra.mxu0 %v1223
    %1746 = vmatprep.subr.bf16.mxu0 %v1228
    %1747 = vmatpush1.bf16.msra.mxu0 %v1227
    %1748 = vmatprep.subr.bf16.mxu0 %v1232
    %1749 = vmatpush1.bf16.msra.mxu0 %v1231
    %1750 = vmatprep.subr.bf16.mxu0 %v1236
    %1751 = vmatpush1.bf16.msra.mxu0 %v1235
    %1752 = vmatprep.subr.bf16.mxu0 %v1240
    %1753 = vmatpush1.bf16.msra.mxu0 %v1239
    %1754 = vmatprep.subr.bf16.mxu0 %v1244
    %1755 = vmatpush1.bf16.msra.mxu0 %v1243
    %1756 = vmatprep.subr.bf16.mxu0 %v1248
    %1757 = vmatpush1.bf16.msra.mxu0 %v1247
    %1758 = vmatprep.subr.bf16.mxu0 %v1252
    %1759 = vmatpush1.bf16.msra.mxu0 %v1251
    %1760 = vmatprep.subr.bf16.mxu0 %v1256
    %1761 = vmatpush1.bf16.msra.mxu0 %v1255
    %1762 = vmatprep.mubr.bf16.mxu0 %v516
    %1763 = vmatmul.mubr.bf16.gmra.mrb[0].mxu0 %v515
    %v1764 = vpop.f32.mrb[0].mxu0
    %v1765 = vadd.f32 %v1724, %v1764
    %v1766 = vpop.f32.mrb[0].mxu0
    %v1767 = vadd.f32 %v1726, %v1766
    %v1768 = vpop.f32.mrb[0].mxu0
    %v1769 = vpop.f32.mrb[0].mxu0
    %1770 = vdwg.mxu0
    %1771 = vmatprep.subr.bf16.mxu0 %v1260
    %1772 = vmatpush1.bf16.msra.mxu0 %v1259
    %1773 = vmatprep.subr.bf16.mxu0 %v1264
    %1774 = vmatpush1.bf16.msra.mxu0 %v1263
    %1775 = vmatprep.subr.bf16.mxu0 %v1268
    %1776 = vmatpush1.bf16.msra.mxu0 %v1267
    %1777 = vmatprep.subr.bf16.mxu0 %v1272
    %1778 = vmatpush1.bf16.msra.mxu0 %v1271
    %1779 = vmatprep.subr.bf16.mxu0 %v1276
    %1780 = vmatpush1.bf16.msra.mxu0 %v1275
    %1781 = vmatprep.subr.bf16.mxu0 %v1280
    %1782 = vmatpush1.bf16.msra.mxu0 %v1279
    %1783 = vmatprep.subr.bf16.mxu0 %v1284
    %1784 = vmatpush1.bf16.msra.mxu0 %v1283
    %1785 = vmatprep.subr.bf16.mxu0 %v1288
    %1786 = vmatpush1.bf16.msra.mxu0 %v1287
    %1787 = vmatprep.subr.bf16.mxu0 %v1292
    %1788 = vmatpush1.bf16.msra.mxu0 %v1291
    %1789 = vmatprep.subr.bf16.mxu0 %v1296
    %1790 = vmatpush1.bf16.msra.mxu0 %v1295
    %1791 = vmatprep.subr.bf16.mxu0 %v1300
    %1792 = vmatpush1.bf16.msra.mxu0 %v1299
    %1793 = vmatprep.subr.bf16.mxu0 %v1304
    %1794 = vmatpush1.bf16.msra.mxu0 %v1303
    %1795 = vmatprep.subr.bf16.mxu0 %v1308
    %1796 = vmatpush1.bf16.msra.mxu0 %v1307
    %1797 = vmatprep.subr.bf16.mxu0 %v1312
    %1798 = vmatpush1.bf16.msra.mxu0 %v1311
    %1799 = vmatprep.subr.bf16.mxu0 %v1316
    %1800 = vmatpush1.bf16.msra.mxu0 %v1315
    %1801 = vmatprep.subr.bf16.mxu0 %v1320
    %1802 = vmatpush1.bf16.msra.mxu0 %v1319
    %1803 = vmatprep.mubr.bf16.mxu0 %v518
    %1804 = vmatmul.mubr.bf16.gmra.mrb[0].mxu0 %v517
    %v1805 = vpop.f32.mrb[0].mxu0
    %v1806 = vadd.f32 %v1765, %v1805
    %v1807 = vpop.f32.mrb[0].mxu0
    %v1808 = vadd.f32 %v1767, %v1807
    %v1809 = vpop.f32.mrb[0].mxu0
    %v1810 = vpop.f32.mrb[0].mxu0
    %1811 = vdwg.mxu0
    %1812 = vmatprep.subr.bf16.mxu0 %v1324
    %1813 = vmatpush1.bf16.msra.mxu0 %v1323
    %1814 = vmatprep.subr.bf16.mxu0 0
    %1815 = vmatpush1.bf16.msra.mxu0 0
    %1816 = vmatprep.subr.bf16.mxu0 0
    %1817 = vmatpush1.bf16.msra.mxu0 0
    %1818 = vmatprep.subr.bf16.mxu0 0
    %1819 = vmatpush1.bf16.msra.mxu0 0
    %1820 = vmatprep.subr.bf16.mxu0 0
    %1821 = vmatpush1.bf16.msra.mxu0 0
    %1822 = vmatprep.subr.bf16.mxu0 0
    %1823 = vmatpush1.bf16.msra.mxu0 0
    %1824 = vmatprep.subr.bf16.mxu0 0
    %1825 = vmatpush1.bf16.msra.mxu0 0
    %1826 = vmatprep.subr.bf16.mxu0 0
    %1827 = vmatpush1.bf16.msra.mxu0 0
    %1828 = vmatprep.subr.bf16.mxu0 0
    %1829 = vmatpush1.bf16.msra.mxu0 0
    %1830 = vmatprep.subr.bf16.mxu0 0
    %1831 = vmatpush1.bf16.msra.mxu0 0
    %1832 = vmatprep.subr.bf16.mxu0 0
    %1833 = vmatpush1.bf16.msra.mxu0 0
    %1834 = vmatprep.subr.bf16.mxu0 0
    %1835 = vmatpush1.bf16.msra.mxu0 0
    %1836 = vmatprep.subr.bf16.mxu0 0
    %1837 = vmatpush1.bf16.msra.mxu0 0
    %1838 = vmatprep.subr.bf16.mxu0 0
    %1839 = vmatpush1.bf16.msra.mxu0 0
    %1840 = vmatprep.subr.bf16.mxu0 0
    %1841 = vmatpush1.bf16.msra.mxu0 0
    %1842 = vmatprep.subr.bf16.mxu0 0
    %1843 = vmatpush1.bf16.msra.mxu0 0
    %1844 = vmatprep.mubr.bf16.mxu0 0
    %1845 = vmatmul.mubr.bf16.gmra.mrb[0].mxu0 %v1523
    %v1846 = vpop.f32.mrb[0].mxu0
    %v1847 = vadd.f32 %v1806, %v1846
    %v1848 = vpop.f32.mrb[0].mxu0
    %v1849 = vadd.f32 %v1808, %v1848
    %v1850 = vpop.f32.mrb[0].mxu0
    %v1851 = vpop.f32.mrb[0].mxu0
    %1852 = vdwg.mxu0
    %v1853 = vmax.f32 %v1683, 0.0
    %v1854 = vmax.f32 %v1685, 0.0
    %v1855 = vmax.f32 %v1847, 0.0
    %v1856 = vmax.f32 %v1849, 0.0
    %v1857 = vpack.c.bf16 %v1853, %v1853
    %v1858 = vpack.c.bf16 %v1854, %v1854
    %v1859 = vpack.c.bf16 %v1855, %v1855
    %v1860 = vpack.c.bf16 %v1856, %v1856
    %v1862 = vlaneseq
    %v1863 = vshrl.u32 %v1862, 7
    %v1864 = vsub.s32 0, %v1863
    %v1865 = vrot.slane %v504, %v1864
    %v1866 = vlaneseq
    %v1867 = vshrl.u32 %v1866, 7
    %v1868 = vsub.s32 1, %v1867
    %v1869 = vrot.slane %v504, %v1868
    %v1870 = vlaneseq
    %v1871 = vshrl.u32 %v1870, 7
    %v1872 = vsub.s32 2, %v1871
    %v1873 = vrot.slane %v504, %v1872
    %v1874 = vlaneseq
    %v1875 = vshrl.u32 %v1874, 7
    %v1876 = vsub.s32 3, %v1875
    %v1877 = vrot.slane %v504, %v1876
    %v2010 = vunpack.c.l.b16 %v311
    %v2011 = vunpack.c.h.b16 %v311
    %v2012 = vunpack.c.l.b16 %v312
    %v2013 = vunpack.c.h.b16 %v312
    %v2014 = vunpack.c.l.b16 %v313
    %v2015 = vunpack.c.h.b16 %v313
    %v2016 = vunpack.c.l.b16 %v314
    %v2017 = vunpack.c.h.b16 %v314
    %v2018 = vunpack.c.l.b16 %v315
    %v2019 = vunpack.c.h.b16 %v315
    %v2020 = vunpack.c.l.b16 %v316
    %v2021 = vunpack.c.h.b16 %v316
    %v2022 = vunpack.c.l.b16 %v317
    %v2023 = vunpack.c.h.b16 %v317
    %v2024 = vunpack.c.l.b16 %v318
    %v2025 = vunpack.c.h.b16 %v318
    %v2026 = vunpack.c.l.b16 %v319
    %v2027 = vunpack.c.h.b16 %v319
    %v2028 = vunpack.c.l.b16 %v320
    %v2029 = vunpack.c.h.b16 %v320
    %v2030 = vunpack.c.l.b16 %v321
    %v2031 = vunpack.c.h.b16 %v321
    %v2032 = vunpack.c.l.b16 %v322
    %v2033 = vunpack.c.h.b16 %v322
    %v2034 = vunpack.c.l.b16 %v323
    %v2035 = vunpack.c.h.b16 %v323
    %v2036 = vunpack.c.l.b16 %v324
    %v2037 = vunpack.c.h.b16 %v324
    %v2038 = vunpack.c.l.b16 %v325
    %v2039 = vunpack.c.h.b16 %v325
    %v2040 = vunpack.c.l.b16 %v326
    %v2041 = vunpack.c.h.b16 %v326
    %v2042 = vunpack.c.l.b16 %v327
    %v2043 = vunpack.c.h.b16 %v327
    %v2044 = vunpack.c.l.b16 %v328
    %v2045 = vunpack.c.h.b16 %v328
    %v2046 = vunpack.c.l.b16 %v329
    %v2047 = vunpack.c.h.b16 %v329
    %v2048 = vunpack.c.l.b16 %v330
    %v2049 = vunpack.c.h.b16 %v330
    %v2050 = vunpack.c.l.b16 %v331
    %v2051 = vunpack.c.h.b16 %v331
    %v2052 = vunpack.c.l.b16 %v332
    %v2053 = vunpack.c.h.b16 %v332
    %v2054 = vunpack.c.l.b16 %v333
    %v2055 = vunpack.c.h.b16 %v333
    %v2056 = vunpack.c.l.b16 %v334
    %v2057 = vunpack.c.h.b16 %v334
    %v2058 = vunpack.c.l.b16 %v335
    %v2059 = vunpack.c.h.b16 %v335
    %v2060 = vunpack.c.l.b16 %v336
    %v2061 = vunpack.c.h.b16 %v336
    %v2062 = vunpack.c.l.b16 %v337
    %v2063 = vunpack.c.h.b16 %v337
    %v2064 = vunpack.c.l.b16 %v338
    %v2065 = vunpack.c.h.b16 %v338
    %v2066 = vunpack.c.l.b16 %v339
    %v2067 = vunpack.c.h.b16 %v339
    %v2068 = vunpack.c.l.b16 %v340
    %v2069 = vunpack.c.h.b16 %v340
    %v2070 = vunpack.c.l.b16 %v341
    %v2071 = vunpack.c.h.b16 %v341
    %v2072 = vunpack.c.l.b16 %v342
    %v2073 = vunpack.c.h.b16 %v342
    %v2074 = vunpack.c.l.b16 %v343
    %v2075 = vunpack.c.h.b16 %v343
    %v2076 = vunpack.c.l.b16 %v344
    %v2077 = vunpack.c.h.b16 %v344
    %v2078 = vunpack.c.l.b16 %v345
    %v2079 = vunpack.c.h.b16 %v345
    %v2080 = vunpack.c.l.b16 %v346
    %v2081 = vunpack.c.h.b16 %v346
    %v2082 = vunpack.c.l.b16 %v347
    %v2083 = vunpack.c.h.b16 %v347
    %v2084 = vunpack.c.l.b16 %v348
    %v2085 = vunpack.c.h.b16 %v348
    %v2086 = vunpack.c.l.b16 %v349
    %v2087 = vunpack.c.h.b16 %v349
    %v2088 = vunpack.c.l.b16 %v350
    %v2089 = vunpack.c.h.b16 %v350
    %v2090 = vunpack.c.l.b16 %v351
    %v2091 = vunpack.c.h.b16 %v351
    %v2092 = vunpack.c.l.b16 %v352
    %v2093 = vunpack.c.h.b16 %v352
    %v2094 = vunpack.c.l.b16 %v353
    %v2095 = vunpack.c.h.b16 %v353
    %v2096 = vunpack.c.l.b16 %v354
    %v2097 = vunpack.c.h.b16 %v354
    %v2098 = vunpack.c.l.b16 %v355
    %v2099 = vunpack.c.h.b16 %v355
    %v2100 = vunpack.c.l.b16 %v356
    %v2101 = vunpack.c.h.b16 %v356
    %v2102 = vunpack.c.l.b16 %v357
    %v2103 = vunpack.c.h.b16 %v357
    %v2104 = vunpack.c.l.b16 %v358
    %v2105 = vunpack.c.h.b16 %v358
    %v2106 = vunpack.c.l.b16 %v359
    %v2107 = vunpack.c.h.b16 %v359
    %v2108 = vunpack.c.l.b16 %v360
    %v2109 = vunpack.c.h.b16 %v360
    %v2110 = vunpack.c.l.b16 %v361
    %v2111 = vunpack.c.h.b16 %v361
    %v2112 = vunpack.c.l.b16 %v362
    %v2113 = vunpack.c.h.b16 %v362
    %v2114 = vunpack.c.l.b16 %v363
    %v2115 = vunpack.c.h.b16 %v363
    %v2116 = vunpack.c.l.b16 %v364
    %v2117 = vunpack.c.h.b16 %v364
    %v2118 = vunpack.c.l.b16 %v365
    %v2119 = vunpack.c.h.b16 %v365
    %v2120 = vunpack.c.l.b16 %v366
    %v2121 = vunpack.c.h.b16 %v366
    %v2122 = vunpack.c.l.b16 %v367
    %v2123 = vunpack.c.h.b16 %v367
    %v2124 = vunpack.c.l.b16 %v368
    %v2125 = vunpack.c.h.b16 %v368
    %v2126 = vunpack.c.l.b16 %v369
    %v2127 = vunpack.c.h.b16 %v369
    %v2128 = vunpack.c.l.b16 %v370
    %v2129 = vunpack.c.h.b16 %v370
    %v2130 = vunpack.c.l.b16 %v371
    %v2131 = vunpack.c.h.b16 %v371
    %v2132 = vunpack.c.l.b16 %v372
    %v2133 = vunpack.c.h.b16 %v372
    %v2134 = vunpack.c.l.b16 %v373
    %v2135 = vunpack.c.h.b16 %v373
    %v2136 = vunpack.c.l.b16 %v374
    %v2137 = vunpack.c.h.b16 %v374
    %v2138 = vunpack.c.l.b16 %v375
    %v2139 = vunpack.c.h.b16 %v375
    %v2140 = vunpack.c.l.b16 %v376
    %v2141 = vunpack.c.h.b16 %v376
    %v2142 = vunpack.c.l.b16 %v377
    %v2143 = vunpack.c.h.b16 %v377
    %v2144 = vunpack.c.l.b16 %v378
    %v2145 = vunpack.c.h.b16 %v378
    %v2146 = vunpack.c.l.b16 %v379
    %v2147 = vunpack.c.h.b16 %v379
    %v2148 = vunpack.c.l.b16 %v380
    %v2149 = vunpack.c.h.b16 %v380
    %v2150 = vunpack.c.l.b16 %v381
    %v2151 = vunpack.c.h.b16 %v381
    %v2152 = vunpack.c.l.b16 %v382
    %v2153 = vunpack.c.h.b16 %v382
    %v2154 = vunpack.c.l.b16 %v383
    %v2155 = vunpack.c.h.b16 %v383
    %v2156 = vunpack.c.l.b16 %v384
    %v2157 = vunpack.c.h.b16 %v384
    %v2158 = vunpack.c.l.b16 %v385
    %v2159 = vunpack.c.h.b16 %v385
    %v2160 = vunpack.c.l.b16 %v386
    %v2161 = vunpack.c.h.b16 %v386
    %v2162 = vunpack.c.l.b16 %v387
    %v2163 = vunpack.c.h.b16 %v387
    %v2164 = vunpack.c.l.b16 %v388
    %v2165 = vunpack.c.h.b16 %v388
    %v2166 = vunpack.c.l.b16 %v389
    %v2167 = vunpack.c.h.b16 %v389
    %v2168 = vunpack.c.l.b16 %v390
    %v2169 = vunpack.c.h.b16 %v390
    %v2170 = vunpack.c.l.b16 %v391
    %v2171 = vunpack.c.h.b16 %v391
    %v2172 = vunpack.c.l.b16 %v392
    %v2173 = vunpack.c.h.b16 %v392
    %v2174 = vunpack.c.l.b16 %v393
    %v2175 = vunpack.c.h.b16 %v393
    %v2176 = vunpack.c.l.b16 %v394
    %v2177 = vunpack.c.h.b16 %v394
    %v2178 = vunpack.c.l.b16 %v395
    %v2179 = vunpack.c.h.b16 %v395
    %v2180 = vunpack.c.l.b16 %v396
    %v2181 = vunpack.c.h.b16 %v396
    %v2182 = vunpack.c.l.b16 %v397
    %v2183 = vunpack.c.h.b16 %v397
    %v2184 = vunpack.c.l.b16 %v398
    %v2185 = vunpack.c.h.b16 %v398
    %v2186 = vunpack.c.l.b16 %v399
    %v2187 = vunpack.c.h.b16 %v399
    %v2188 = vunpack.c.l.b16 %v400
    %v2189 = vunpack.c.h.b16 %v400
    %v2190 = vunpack.c.l.b16 %v401
    %v2191 = vunpack.c.h.b16 %v401
    %v2192 = vunpack.c.l.b16 %v402
    %v2193 = vunpack.c.h.b16 %v402
    %v2194 = vunpack.c.l.b16 %v403
    %v2195 = vunpack.c.h.b16 %v403
    %v2196 = vunpack.c.l.b16 %v404
    %v2197 = vunpack.c.h.b16 %v404
    %v2198 = vunpack.c.l.b16 %v405
    %v2199 = vunpack.c.h.b16 %v405
    %v2200 = vunpack.c.l.b16 %v406
    %v2201 = vunpack.c.h.b16 %v406
    %v2202 = vunpack.c.l.b16 %v407
    %v2203 = vunpack.c.h.b16 %v407
    %v2204 = vunpack.c.l.b16 %v408
    %v2205 = vunpack.c.h.b16 %v408
    %v2206 = vunpack.c.l.b16 %v409
    %v2207 = vunpack.c.h.b16 %v409
    %v2208 = vunpack.c.l.b16 %v410
    %v2209 = vunpack.c.h.b16 %v410
    %v2210 = vunpack.c.l.b16 %v411
    %v2211 = vunpack.c.h.b16 %v411
    %v2212 = vunpack.c.l.b16 %v412
    %v2213 = vunpack.c.h.b16 %v412
    %v2214 = vunpack.c.l.b16 %v413
    %v2215 = vunpack.c.h.b16 %v413
    %v2216 = vunpack.c.l.b16 %v414
    %v2217 = vunpack.c.h.b16 %v414
    %v2218 = vunpack.c.l.b16 %v415
    %v2219 = vunpack.c.h.b16 %v415
    %v2220 = vunpack.c.l.b16 %v416
    %v2221 = vunpack.c.h.b16 %v416
    %v2222 = vunpack.c.l.b16 %v417
    %v2223 = vunpack.c.h.b16 %v417
    %v2224 = vunpack.c.l.b16 %v418
    %v2225 = vunpack.c.h.b16 %v418
    %v2226 = vunpack.c.l.b16 %v419
    %v2227 = vunpack.c.h.b16 %v419
    %v2228 = vunpack.c.l.b16 %v420
    %v2229 = vunpack.c.h.b16 %v420
    %v2230 = vunpack.c.l.b16 %v421
    %v2231 = vunpack.c.h.b16 %v421
    %v2232 = vunpack.c.l.b16 %v422
    %v2233 = vunpack.c.h.b16 %v422
    %v2234 = vunpack.c.l.b16 %v423
    %v2235 = vunpack.c.h.b16 %v423
    %v2236 = vunpack.c.l.b16 %v424
    %v2237 = vunpack.c.h.b16 %v424
    %v2238 = vunpack.c.l.b16 %v425
    %v2239 = vunpack.c.h.b16 %v425
    %v2240 = vunpack.c.l.b16 %v426
    %v2241 = vunpack.c.h.b16 %v426
    %v2242 = vunpack.c.l.b16 %v427
    %v2243 = vunpack.c.h.b16 %v427
    %v2244 = vunpack.c.l.b16 %v428
    %v2245 = vunpack.c.h.b16 %v428
    %v2246 = vunpack.c.l.b16 %v429
    %v2247 = vunpack.c.h.b16 %v429
    %v2248 = vunpack.c.l.b16 %v430
    %v2249 = vunpack.c.h.b16 %v430
    %v2250 = vunpack.c.l.b16 %v431
    %v2251 = vunpack.c.h.b16 %v431
    %v2252 = vunpack.c.l.b16 %v432
    %v2253 = vunpack.c.h.b16 %v432
    %v2254 = vunpack.c.l.b16 %v433
    %v2255 = vunpack.c.h.b16 %v433
    %v2256 = vunpack.c.l.b16 %v434
    %v2257 = vunpack.c.h.b16 %v434
    %v2258 = vunpack.c.l.b16 %v435
    %v2259 = vunpack.c.h.b16 %v435
    %v2260 = vunpack.c.l.b16 %v436
    %v2261 = vunpack.c.h.b16 %v436
    %v2262 = vunpack.c.l.b16 %v437
    %v2263 = vunpack.c.h.b16 %v437
    %v2264 = vunpack.c.l.b16 %v438
    %v2265 = vunpack.c.h.b16 %v438
    %v2266 = vpack.c.b16 %v2014, %v2010
    %v2267 = vpack.c.b16 %v2015, %v2011
    %v2268 = vpack.c.b16 %v2016, %v2012
    %v2269 = vpack.c.b16 %v2017, %v2013
    %v2270 = vpack.c.b16 %v2022, %v2018
    %v2271 = vpack.c.b16 %v2023, %v2019
    %v2272 = vpack.c.b16 %v2024, %v2020
    %v2273 = vpack.c.b16 %v2025, %v2021
    %v2274 = vpack.c.b16 %v2030, %v2026
    %v2275 = vpack.c.b16 %v2031, %v2027
    %v2276 = vpack.c.b16 %v2032, %v2028
    %v2277 = vpack.c.b16 %v2033, %v2029
    %v2278 = vpack.c.b16 %v2038, %v2034
    %v2279 = vpack.c.b16 %v2039, %v2035
    %v2280 = vpack.c.b16 %v2040, %v2036
    %v2281 = vpack.c.b16 %v2041, %v2037
    %v2282 = vpack.c.b16 %v2046, %v2042
    %v2283 = vpack.c.b16 %v2047, %v2043
    %v2284 = vpack.c.b16 %v2048, %v2044
    %v2285 = vpack.c.b16 %v2049, %v2045
    %v2286 = vpack.c.b16 %v2054, %v2050
    %v2287 = vpack.c.b16 %v2055, %v2051
    %v2288 = vpack.c.b16 %v2056, %v2052
    %v2289 = vpack.c.b16 %v2057, %v2053
    %v2290 = vpack.c.b16 %v2062, %v2058
    %v2291 = vpack.c.b16 %v2063, %v2059
    %v2292 = vpack.c.b16 %v2064, %v2060
    %v2293 = vpack.c.b16 %v2065, %v2061
    %v2294 = vpack.c.b16 %v2070, %v2066
    %v2295 = vpack.c.b16 %v2071, %v2067
    %v2296 = vpack.c.b16 %v2072, %v2068
    %v2297 = vpack.c.b16 %v2073, %v2069
    %v2298 = vpack.c.b16 %v2078, %v2074
    %v2299 = vpack.c.b16 %v2079, %v2075
    %v2300 = vpack.c.b16 %v2080, %v2076
    %v2301 = vpack.c.b16 %v2081, %v2077
    %v2302 = vpack.c.b16 %v2086, %v2082
    %v2303 = vpack.c.b16 %v2087, %v2083
    %v2304 = vpack.c.b16 %v2088, %v2084
    %v2305 = vpack.c.b16 %v2089, %v2085
    %v2306 = vpack.c.b16 %v2094, %v2090
    %v2307 = vpack.c.b16 %v2095, %v2091
    %v2308 = vpack.c.b16 %v2096, %v2092
    %v2309 = vpack.c.b16 %v2097, %v2093
    %v2310 = vpack.c.b16 %v2102, %v2098
    %v2311 = vpack.c.b16 %v2103, %v2099
    %v2312 = vpack.c.b16 %v2104, %v2100
    %v2313 = vpack.c.b16 %v2105, %v2101
    %v2314 = vpack.c.b16 %v2110, %v2106
    %v2315 = vpack.c.b16 %v2111, %v2107
    %v2316 = vpack.c.b16 %v2112, %v2108
    %v2317 = vpack.c.b16 %v2113, %v2109
    %v2318 = vpack.c.b16 %v2118, %v2114
    %v2319 = vpack.c.b16 %v2119, %v2115
    %v2320 = vpack.c.b16 %v2120, %v2116
    %v2321 = vpack.c.b16 %v2121, %v2117
    %v2322 = vpack.c.b16 %v2126, %v2122
    %v2323 = vpack.c.b16 %v2127, %v2123
    %v2324 = vpack.c.b16 %v2128, %v2124
    %v2325 = vpack.c.b16 %v2129, %v2125
    %v2326 = vpack.c.b16 %v2134, %v2130
    %v2327 = vpack.c.b16 %v2135, %v2131
    %v2328 = vpack.c.b16 %v2136, %v2132
    %v2329 = vpack.c.b16 %v2137, %v2133
    %v2330 = vpack.c.b16 %v2142, %v2138
    %v2331 = vpack.c.b16 %v2143, %v2139
    %v2332 = vpack.c.b16 %v2144, %v2140
    %v2333 = vpack.c.b16 %v2145, %v2141
    %v2334 = vpack.c.b16 %v2150, %v2146
    %v2335 = vpack.c.b16 %v2151, %v2147
    %v2336 = vpack.c.b16 %v2152, %v2148
    %v2337 = vpack.c.b16 %v2153, %v2149
    %v2338 = vpack.c.b16 %v2158, %v2154
    %v2339 = vpack.c.b16 %v2159, %v2155
    %v2340 = vpack.c.b16 %v2160, %v2156
    %v2341 = vpack.c.b16 %v2161, %v2157
    %v2342 = vpack.c.b16 %v2166, %v2162
    %v2343 = vpack.c.b16 %v2167, %v2163
    %v2344 = vpack.c.b16 %v2168, %v2164
    %v2345 = vpack.c.b16 %v2169, %v2165
    %v2346 = vpack.c.b16 %v2174, %v2170
    %v2347 = vpack.c.b16 %v2175, %v2171
    %v2348 = vpack.c.b16 %v2176, %v2172
    %v2349 = vpack.c.b16 %v2177, %v2173
    %v2350 = vpack.c.b16 %v2182, %v2178
    %v2351 = vpack.c.b16 %v2183, %v2179
    %v2352 = vpack.c.b16 %v2184, %v2180
    %v2353 = vpack.c.b16 %v2185, %v2181
    %v2354 = vpack.c.b16 %v2190, %v2186
    %v2355 = vpack.c.b16 %v2191, %v2187
    %v2356 = vpack.c.b16 %v2192, %v2188
    %v2357 = vpack.c.b16 %v2193, %v2189
    %v2358 = vpack.c.b16 %v2198, %v2194
    %v2359 = vpack.c.b16 %v2199, %v2195
    %v2360 = vpack.c.b16 %v2200, %v2196
    %v2361 = vpack.c.b16 %v2201, %v2197
    %v2362 = vpack.c.b16 %v2206, %v2202
    %v2363 = vpack.c.b16 %v2207, %v2203
    %v2364 = vpack.c.b16 %v2208, %v2204
    %v2365 = vpack.c.b16 %v2209, %v2205
    %v2366 = vpack.c.b16 %v2214, %v2210
    %v2367 = vpack.c.b16 %v2215, %v2211
    %v2368 = vpack.c.b16 %v2216, %v2212
    %v2369 = vpack.c.b16 %v2217, %v2213
    %v2370 = vpack.c.b16 %v2222, %v2218
    %v2371 = vpack.c.b16 %v2223, %v2219
    %v2372 = vpack.c.b16 %v2224, %v2220
    %v2373 = vpack.c.b16 %v2225, %v2221
    %v2374 = vpack.c.b16 %v2230, %v2226
    %v2375 = vpack.c.b16 %v2231, %v2227
    %v2376 = vpack.c.b16 %v2232, %v2228
    %v2377 = vpack.c.b16 %v2233, %v2229
    %v2378 = vpack.c.b16 %v2238, %v2234
    %v2379 = vpack.c.b16 %v2239, %v2235
    %v2380 = vpack.c.b16 %v2240, %v2236
    %v2381 = vpack.c.b16 %v2241, %v2237
    %v2382 = vpack.c.b16 %v2246, %v2242
    %v2383 = vpack.c.b16 %v2247, %v2243
    %v2384 = vpack.c.b16 %v2248, %v2244
    %v2385 = vpack.c.b16 %v2249, %v2245
    %v2386 = vpack.c.b16 %v2254, %v2250
    %v2387 = vpack.c.b16 %v2255, %v2251
    %v2388 = vpack.c.b16 %v2256, %v2252
    %v2389 = vpack.c.b16 %v2257, %v2253
    %v2390 = vpack.c.b16 %v2262, %v2258
    %v2391 = vpack.c.b16 %v2263, %v2259
    %v2392 = vpack.c.b16 %v2264, %v2260
    %v2393 = vpack.c.b16 %v2265, %v2261
    %2522 = vmatprep.subr.bf16.mxu0 %v2267
    %2523 = vmatpush1.bf16.msra.mxu0 %v2266
    %2524 = vmatprep.subr.bf16.mxu0 %v2271
    %2525 = vmatpush1.bf16.msra.mxu0 %v2270
    %2526 = vmatprep.subr.bf16.mxu0 %v2275
    %2527 = vmatpush1.bf16.msra.mxu0 %v2274
    %2528 = vmatprep.subr.bf16.mxu0 %v2279
    %2529 = vmatpush1.bf16.msra.mxu0 %v2278
    %2530 = vmatprep.subr.bf16.mxu0 %v2283
    %2531 = vmatpush1.bf16.msra.mxu0 %v2282
    %2532 = vmatprep.subr.bf16.mxu0 %v2287
    %2533 = vmatpush1.bf16.msra.mxu0 %v2286
    %2534 = vmatprep.subr.bf16.mxu0 %v2291
    %2535 = vmatpush1.bf16.msra.mxu0 %v2290
    %2536 = vmatprep.subr.bf16.mxu0 %v2295
    %2537 = vmatpush1.bf16.msra.mxu0 %v2294
    %2538 = vmatprep.subr.bf16.mxu0 %v2299
    %2539 = vmatpush1.bf16.msra.mxu0 %v2298
    %2540 = vmatprep.subr.bf16.mxu0 %v2303
    %2541 = vmatpush1.bf16.msra.mxu0 %v2302
    %2542 = vmatprep.subr.bf16.mxu0 %v2307
    %2543 = vmatpush1.bf16.msra.mxu0 %v2306
    %2544 = vmatprep.subr.bf16.mxu0 %v2311
    %2545 = vmatpush1.bf16.msra.mxu0 %v2310
    %2546 = vmatprep.subr.bf16.mxu0 %v2315
    %2547 = vmatpush1.bf16.msra.mxu0 %v2314
    %2548 = vmatprep.subr.bf16.mxu0 %v2319
    %2549 = vmatpush1.bf16.msra.mxu0 %v2318
    %2550 = vmatprep.subr.bf16.mxu0 %v2323
    %2551 = vmatpush1.bf16.msra.mxu0 %v2322
    %2552 = vmatprep.subr.bf16.mxu0 %v2327
    %2553 = vmatpush1.bf16.msra.mxu0 %v2326
    %2554 = vmatprep.mubr.bf16.mxu0 %v1858
    %2555 = vmatmul.mubr.bf16.gmra.mrb[0].mxu0 %v1857
    %v2556 = vpop.f32.mrb[0].mxu0
    %v2557 = vadd.f32 %v1865, %v2556
    %v2558 = vpop.f32.mrb[0].mxu0
    %v2559 = vadd.f32 %v1869, %v2558
    %v2560 = vpop.f32.mrb[0].mxu0
    %v2561 = vpop.f32.mrb[0].mxu0
    %2562 = vdwg.mxu0
    %2563 = vmatprep.subr.bf16.mxu0 %v2331
    %2564 = vmatpush1.bf16.msra.mxu0 %v2330
    %2565 = vmatprep.subr.bf16.mxu0 %v2335
    %2566 = vmatpush1.bf16.msra.mxu0 %v2334
    %2567 = vmatprep.subr.bf16.mxu0 %v2339
    %2568 = vmatpush1.bf16.msra.mxu0 %v2338
    %2569 = vmatprep.subr.bf16.mxu0 %v2343
    %2570 = vmatpush1.bf16.msra.mxu0 %v2342
    %2571 = vmatprep.subr.bf16.mxu0 %v2347
    %2572 = vmatpush1.bf16.msra.mxu0 %v2346
    %2573 = vmatprep.subr.bf16.mxu0 %v2351
    %2574 = vmatpush1.bf16.msra.mxu0 %v2350
    %2575 = vmatprep.subr.bf16.mxu0 %v2355
    %2576 = vmatpush1.bf16.msra.mxu0 %v2354
    %2577 = vmatprep.subr.bf16.mxu0 %v2359
    %2578 = vmatpush1.bf16.msra.mxu0 %v2358
    %2579 = vmatprep.subr.bf16.mxu0 %v2363
    %2580 = vmatpush1.bf16.msra.mxu0 %v2362
    %2581 = vmatprep.subr.bf16.mxu0 %v2367
    %2582 = vmatpush1.bf16.msra.mxu0 %v2366
    %2583 = vmatprep.subr.bf16.mxu0 %v2371
    %2584 = vmatpush1.bf16.msra.mxu0 %v2370
    %2585 = vmatprep.subr.bf16.mxu0 %v2375
    %2586 = vmatpush1.bf16.msra.mxu0 %v2374
    %2587 = vmatprep.subr.bf16.mxu0 %v2379
    %2588 = vmatpush1.bf16.msra.mxu0 %v2378
    %2589 = vmatprep.subr.bf16.mxu0 %v2383
    %2590 = vmatpush1.bf16.msra.mxu0 %v2382
    %2591 = vmatprep.subr.bf16.mxu0 %v2387
    %2592 = vmatpush1.bf16.msra.mxu0 %v2386
    %2593 = vmatprep.subr.bf16.mxu0 %v2391
    %2594 = vmatpush1.bf16.msra.mxu0 %v2390
    %2595 = vmatprep.mubr.bf16.mxu0 %v1860
    %2596 = vmatmul.mubr.bf16.gmra.mrb[0].mxu0 %v1859
    %v2597 = vpop.f32.mrb[0].mxu0
    %v2598 = vadd.f32 %v2557, %v2597
    %v2599 = vpop.f32.mrb[0].mxu0
    %v2600 = vadd.f32 %v2559, %v2599
    %v2601 = vpop.f32.mrb[0].mxu0
    %v2602 = vpop.f32.mrb[0].mxu0
    %2603 = vdwg.mxu0
    %2604 = vmatprep.subr.bf16.mxu0 %v2269
    %2605 = vmatpush1.bf16.msra.mxu0 %v2268
    %2606 = vmatprep.subr.bf16.mxu0 %v2273
    %2607 = vmatpush1.bf16.msra.mxu0 %v2272
    %2608 = vmatprep.subr.bf16.mxu0 %v2277
    %2609 = vmatpush1.bf16.msra.mxu0 %v2276
    %2610 = vmatprep.subr.bf16.mxu0 %v2281
    %2611 = vmatpush1.bf16.msra.mxu0 %v2280
    %2612 = vmatprep.subr.bf16.mxu0 %v2285
    %2613 = vmatpush1.bf16.msra.mxu0 %v2284
    %2614 = vmatprep.subr.bf16.mxu0 %v2289
    %2615 = vmatpush1.bf16.msra.mxu0 %v2288
    %2616 = vmatprep.subr.bf16.mxu0 %v2293
    %2617 = vmatpush1.bf16.msra.mxu0 %v2292
    %2618 = vmatprep.subr.bf16.mxu0 %v2297
    %2619 = vmatpush1.bf16.msra.mxu0 %v2296
    %2620 = vmatprep.subr.bf16.mxu0 %v2301
    %2621 = vmatpush1.bf16.msra.mxu0 %v2300
    %2622 = vmatprep.subr.bf16.mxu0 %v2305
    %2623 = vmatpush1.bf16.msra.mxu0 %v2304
    %2624 = vmatprep.subr.bf16.mxu0 %v2309
    %2625 = vmatpush1.bf16.msra.mxu0 %v2308
    %2626 = vmatprep.subr.bf16.mxu0 %v2313
    %2627 = vmatpush1.bf16.msra.mxu0 %v2312
    %2628 = vmatprep.subr.bf16.mxu0 %v2317
    %2629 = vmatpush1.bf16.msra.mxu0 %v2316
    %2630 = vmatprep.subr.bf16.mxu0 %v2321
    %2631 = vmatpush1.bf16.msra.mxu0 %v2320
    %2632 = vmatprep.subr.bf16.mxu0 %v2325
    %2633 = vmatpush1.bf16.msra.mxu0 %v2324
    %2634 = vmatprep.subr.bf16.mxu0 %v2329
    %2635 = vmatpush1.bf16.msra.mxu0 %v2328
    %2636 = vmatprep.mubr.bf16.mxu0 %v1858
    %2637 = vmatmul.mubr.bf16.gmra.mrb[0].mxu0 %v1857
    %v2638 = vpop.f32.mrb[0].mxu0
    %v2639 = vadd.f32 %v1873, %v2638
    %v2640 = vpop.f32.mrb[0].mxu0
    %v2641 = vadd.f32 %v1877, %v2640
    %v2642 = vpop.f32.mrb[0].mxu0
    %v2643 = vpop.f32.mrb[0].mxu0
    %2644 = vdwg.mxu0
    %2645 = vmatprep.subr.bf16.mxu0 %v2333
    %2646 = vmatpush1.bf16.msra.mxu0 %v2332
    %2647 = vmatprep.subr.bf16.mxu0 %v2337
    %2648 = vmatpush1.bf16.msra.mxu0 %v2336
    %2649 = vmatprep.subr.bf16.mxu0 %v2341
    %2650 = vmatpush1.bf16.msra.mxu0 %v2340
    %2651 = vmatprep.subr.bf16.mxu0 %v2345
    %2652 = vmatpush1.bf16.msra.mxu0 %v2344
    %2653 = vmatprep.subr.bf16.mxu0 %v2349
    %2654 = vmatpush1.bf16.msra.mxu0 %v2348
    %2655 = vmatprep.subr.bf16.mxu0 %v2353
    %2656 = vmatpush1.bf16.msra.mxu0 %v2352
    %2657 = vmatprep.subr.bf16.mxu0 %v2357
    %2658 = vmatpush1.bf16.msra.mxu0 %v2356
    %2659 = vmatprep.subr.bf16.mxu0 %v2361
    %2660 = vmatpush1.bf16.msra.mxu0 %v2360
    %2661 = vmatprep.subr.bf16.mxu0 %v2365
    %2662 = vmatpush1.bf16.msra.mxu0 %v2364
    %2663 = vmatprep.subr.bf16.mxu0 %v2369
    %2664 = vmatpush1.bf16.msra.mxu0 %v2368
    %2665 = vmatprep.subr.bf16.mxu0 %v2373
    %2666 = vmatpush1.bf16.msra.mxu0 %v2372
    %2667 = vmatprep.subr.bf16.mxu0 %v2377
    %2668 = vmatpush1.bf16.msra.mxu0 %v2376
    %2669 = vmatprep.subr.bf16.mxu0 %v2381
    %2670 = vmatpush1.bf16.msra.mxu0 %v2380
    %2671 = vmatprep.subr.bf16.mxu0 %v2385
    %2672 = vmatpush1.bf16.msra.mxu0 %v2384
    %2673 = vmatprep.subr.bf16.mxu0 %v2389
    %2674 = vmatpush1.bf16.msra.mxu0 %v2388
    %2675 = vmatprep.subr.bf16.mxu0 %v2393
    %2676 = vmatpush1.bf16.msra.mxu0 %v2392
    %2677 = vmatprep.mubr.bf16.mxu0 %v1860
    %2678 = vmatmul.mubr.bf16.gmra.mrb[0].mxu0 %v1859
    %v2679 = vpop.f32.mrb[0].mxu0
    %v2680 = vadd.f32 %v2639, %v2679
    %v2681 = vpop.f32.mrb[0].mxu0
    %v2682 = vadd.f32 %v2641, %v2681
    %v2683 = vpop.f32.mrb[0].mxu0
    %v2684 = vpop.f32.mrb[0].mxu0
    %2685 = vdwg.mxu0
    %v2686 = vmax.f32 %v2598, 0.0
    %v2687 = vmax.f32 %v2600, 0.0
    %v2688 = vmax.f32 %v2680, 0.0
    %v2689 = vmax.f32 %v2682, 0.0
    %v2690 = vpack.c.bf16 %v2686, %v2686
    %v2691 = vpack.c.bf16 %v2687, %v2687
    %v2692 = vpack.c.bf16 %v2688, %v2688
    %v2693 = vpack.c.bf16 %v2689, %v2689
    %v2695 = vlaneseq
    %v2696 = vshrl.u32 %v2695, 7
    %v2697 = vsub.s32 0, %v2696
    %v2698 = vrot.slane %v505, %v2697
    %v2764 = vunpack.c.l.b16 %v439
    %v2765 = vunpack.c.l.b16 %v440
    %v2766 = vunpack.c.l.b16 %v441
    %v2767 = vunpack.c.l.b16 %v442
    %v2768 = vunpack.c.l.b16 %v443
    %v2769 = vunpack.c.l.b16 %v444
    %v2770 = vunpack.c.l.b16 %v445
    %v2771 = vunpack.c.l.b16 %v446
    %v2772 = vunpack.c.l.b16 %v447
    %v2773 = vunpack.c.l.b16 %v448
    %v2774 = vunpack.c.l.b16 %v449
    %v2775 = vunpack.c.l.b16 %v450
    %v2776 = vunpack.c.l.b16 %v451
    %v2777 = vunpack.c.l.b16 %v452
    %v2778 = vunpack.c.l.b16 %v453
    %v2779 = vunpack.c.l.b16 %v454
    %v2780 = vunpack.c.l.b16 %v455
    %v2781 = vunpack.c.l.b16 %v456
    %v2782 = vunpack.c.l.b16 %v457
    %v2783 = vunpack.c.l.b16 %v458
    %v2784 = vunpack.c.l.b16 %v459
    %v2785 = vunpack.c.l.b16 %v460
    %v2786 = vunpack.c.l.b16 %v461
    %v2787 = vunpack.c.l.b16 %v462
    %v2788 = vunpack.c.l.b16 %v463
    %v2789 = vunpack.c.l.b16 %v464
    %v2790 = vunpack.c.l.b16 %v465
    %v2791 = vunpack.c.l.b16 %v466
    %v2792 = vunpack.c.l.b16 %v467
    %v2793 = vunpack.c.l.b16 %v468
    %v2794 = vunpack.c.l.b16 %v469
    %v2795 = vunpack.c.l.b16 %v470
    %v2796 = vunpack.c.l.b16 %v471
    %v2797 = vunpack.c.l.b16 %v472
    %v2798 = vunpack.c.l.b16 %v473
    %v2799 = vunpack.c.l.b16 %v474
    %v2800 = vunpack.c.l.b16 %v475
    %v2801 = vunpack.c.l.b16 %v476
    %v2802 = vunpack.c.l.b16 %v477
    %v2803 = vunpack.c.l.b16 %v478
    %v2804 = vunpack.c.l.b16 %v479
    %v2805 = vunpack.c.l.b16 %v480
    %v2806 = vunpack.c.l.b16 %v481
    %v2807 = vunpack.c.l.b16 %v482
    %v2808 = vunpack.c.l.b16 %v483
    %v2809 = vunpack.c.l.b16 %v484
    %v2810 = vunpack.c.l.b16 %v485
    %v2811 = vunpack.c.l.b16 %v486
    %v2812 = vunpack.c.l.b16 %v487
    %v2813 = vunpack.c.l.b16 %v488
    %v2814 = vunpack.c.l.b16 %v489
    %v2815 = vunpack.c.l.b16 %v490
    %v2816 = vunpack.c.l.b16 %v491
    %v2817 = vunpack.c.l.b16 %v492
    %v2818 = vunpack.c.l.b16 %v493
    %v2819 = vunpack.c.l.b16 %v494
    %v2820 = vunpack.c.l.b16 %v495
    %v2821 = vunpack.c.l.b16 %v496
    %v2822 = vunpack.c.l.b16 %v497
    %v2823 = vunpack.c.l.b16 %v498
    %v2824 = vunpack.c.l.b16 %v499
    %v2825 = vunpack.c.l.b16 %v500
    %v2826 = vunpack.c.l.b16 %v501
    %v2827 = vunpack.c.l.b16 %v502
    %v2828 = vpack.c.b16 %v2765, %v2764
    %v2829 = vpack.c.b16 %v2767, %v2766
    %v2830 = vpack.c.b16 %v2769, %v2768
    %v2831 = vpack.c.b16 %v2771, %v2770
    %v2832 = vpack.c.b16 %v2773, %v2772
    %v2833 = vpack.c.b16 %v2775, %v2774
    %v2834 = vpack.c.b16 %v2777, %v2776
    %v2835 = vpack.c.b16 %v2779, %v2778
    %v2836 = vpack.c.b16 %v2781, %v2780
    %v2837 = vpack.c.b16 %v2783, %v2782
    %v2838 = vpack.c.b16 %v2785, %v2784
    %v2839 = vpack.c.b16 %v2787, %v2786
    %v2840 = vpack.c.b16 %v2789, %v2788
    %v2841 = vpack.c.b16 %v2791, %v2790
    %v2842 = vpack.c.b16 %v2793, %v2792
    %v2843 = vpack.c.b16 %v2795, %v2794
    %v2844 = vpack.c.b16 %v2797, %v2796
    %v2845 = vpack.c.b16 %v2799, %v2798
    %v2846 = vpack.c.b16 %v2801, %v2800
    %v2847 = vpack.c.b16 %v2803, %v2802
    %v2848 = vpack.c.b16 %v2805, %v2804
    %v2849 = vpack.c.b16 %v2807, %v2806
    %v2850 = vpack.c.b16 %v2809, %v2808
    %v2851 = vpack.c.b16 %v2811, %v2810
    %v2852 = vpack.c.b16 %v2813, %v2812
    %v2853 = vpack.c.b16 %v2815, %v2814
    %v2854 = vpack.c.b16 %v2817, %v2816
    %v2855 = vpack.c.b16 %v2819, %v2818
    %v2856 = vpack.c.b16 %v2821, %v2820
    %v2857 = vpack.c.b16 %v2823, %v2822
    %v2858 = vpack.c.b16 %v2825, %v2824
    %v2859 = vpack.c.b16 %v2827, %v2826
    %2892 = vmatprep.subr.bf16.mxu0 0
    %2893 = vmatpush1.bf16.msra.mxu0 %v2828
    %2894 = vmatprep.subr.bf16.mxu0 0
    %2895 = vmatpush1.bf16.msra.mxu0 %v2829
    %2896 = vmatprep.subr.bf16.mxu0 0
    %2897 = vmatpush1.bf16.msra.mxu0 %v2830
    %2898 = vmatprep.subr.bf16.mxu0 0
    %2899 = vmatpush1.bf16.msra.mxu0 %v2831
    %2900 = vmatprep.subr.bf16.mxu0 0
    %2901 = vmatpush1.bf16.msra.mxu0 %v2832
    %2902 = vmatprep.subr.bf16.mxu0 0
    %2903 = vmatpush1.bf16.msra.mxu0 %v2833
    %2904 = vmatprep.subr.bf16.mxu0 0
    %2905 = vmatpush1.bf16.msra.mxu0 %v2834
    %2906 = vmatprep.subr.bf16.mxu0 0
    %2907 = vmatpush1.bf16.msra.mxu0 %v2835
    %2908 = vmatprep.subr.bf16.mxu0 0
    %2909 = vmatpush1.bf16.msra.mxu0 %v2836
    %2910 = vmatprep.subr.bf16.mxu0 0
    %2911 = vmatpush1.bf16.msra.mxu0 %v2837
    %2912 = vmatprep.subr.bf16.mxu0 0
    %2913 = vmatpush1.bf16.msra.mxu0 %v2838
    %2914 = vmatprep.subr.bf16.mxu0 0
    %2915 = vmatpush1.bf16.msra.mxu0 %v2839
    %2916 = vmatprep.subr.bf16.mxu0 0
    %2917 = vmatpush1.bf16.msra.mxu0 %v2840
    %2918 = vmatprep.subr.bf16.mxu0 0
    %2919 = vmatpush1.bf16.msra.mxu0 %v2841
    %2920 = vmatprep.subr.bf16.mxu0 0
    %2921 = vmatpush1.bf16.msra.mxu0 %v2842
    %2922 = vmatprep.subr.bf16.mxu0 0
    %2923 = vmatpush1.bf16.msra.mxu0 %v2843
    %2924 = vmatprep.mubr.bf16.mxu0 %v2691
    %2925 = vmatmul.mubr.bf16.gmra.mrb[0].mxu0 %v2690
    %v2926 = vpop.f32.mrb[0].mxu0
    %v2927 = vadd.f32 %v2698, %v2926
    %v2928 = vpop.f32.mrb[0].mxu0
    %v2929 = vpop.f32.mrb[0].mxu0
    %v2930 = vpop.f32.mrb[0].mxu0
    %2931 = vdwg.mxu0
    %2932 = vmatprep.subr.bf16.mxu0 0
    %2933 = vmatpush1.bf16.msra.mxu0 %v2844
    %2934 = vmatprep.subr.bf16.mxu0 0
    %2935 = vmatpush1.bf16.msra.mxu0 %v2845
    %2936 = vmatprep.subr.bf16.mxu0 0
    %2937 = vmatpush1.bf16.msra.mxu0 %v2846
    %2938 = vmatprep.subr.bf16.mxu0 0
    %2939 = vmatpush1.bf16.msra.mxu0 %v2847
    %2940 = vmatprep.subr.bf16.mxu0 0
    %2941 = vmatpush1.bf16.msra.mxu0 %v2848
    %2942 = vmatprep.subr.bf16.mxu0 0
    %2943 = vmatpush1.bf16.msra.mxu0 %v2849
    %2944 = vmatprep.subr.bf16.mxu0 0
    %2945 = vmatpush1.bf16.msra.mxu0 %v2850
    %2946 = vmatprep.subr.bf16.mxu0 0
    %2947 = vmatpush1.bf16.msra.mxu0 %v2851
    %2948 = vmatprep.subr.bf16.mxu0 0
    %2949 = vmatpush1.bf16.msra.mxu0 %v2852
    %2950 = vmatprep.subr.bf16.mxu0 0
    %2951 = vmatpush1.bf16.msra.mxu0 %v2853
    %2952 = vmatprep.subr.bf16.mxu0 0
    %2953 = vmatpush1.bf16.msra.mxu0 %v2854
    %2954 = vmatprep.subr.bf16.mxu0 0
    %2955 = vmatpush1.bf16.msra.mxu0 %v2855
    %2956 = vmatprep.subr.bf16.mxu0 0
    %2957 = vmatpush1.bf16.msra.mxu0 %v2856
    %2958 = vmatprep.subr.bf16.mxu0 0
    %2959 = vmatpush1.bf16.msra.mxu0 %v2857
    %2960 = vmatprep.subr.bf16.mxu0 0
    %2961 = vmatpush1.bf16.msra.mxu0 %v2858
    %2962 = vmatprep.subr.bf16.mxu0 0
    %2963 = vmatpush1.bf16.msra.mxu0 %v2859
    %2964 = vmatprep.mubr.bf16.mxu0 %v2693
    %2965 = vmatmul.mubr.bf16.gmra.mrb[0].mxu0 %v2692
    %v2966 = vpop.f32.mrb[0].mxu0
    %v2967 = vadd.f32 %v2927, %v2966
    %v2968 = vpop.f32.mrb[0].mxu0
    %v2969 = vpop.f32.mrb[0].mxu0
    %v2970 = vpop.f32.mrb[0].mxu0
    %2971 = vdwg.mxu0
    %v2972 = vpack.c.bf16 %v2967, %v2967
    %2973 = vst [vmem:[#allocation14] sm:$0xf] %v2972
    // Predicated region
    $region58: #{neural_network_forward.1} parent=1 // pred_check
      _
    $region59: #{neural_network_forward.1} parent=1 // pred_check_branch
      %2975 = sbr.rel (0) target = $region61
    $region60: #{neural_network_forward.1} parent=1 // pred_region
      %s2977 = ssub.s32 64, 64
      %2978 = vsyncadd [#allocation4], %s2977
      %s2980 = sshll.u32 [#allocation14], 4
      %s2981 = int_to_ptr.vmem [resolvable:$true] %s2980
      %2983 = dma.vmem_to_hbm [thread:$0]  %s2981, 64, %s7, [#allocation4]
    $region61: #{neural_network_forward.1} parent=1 // pred_fallthru
      _
    // Predicated region
    $region62: #{neural_network_forward.1} parent=1 // pred_check
      _
    $region63: #{neural_network_forward.1} parent=1 // pred_check_branch
      %2985 = sbr.rel (0) target = $region65
    $region64: #{neural_network_forward.1} parent=1 // pred_region
      %2986 = dma.done [#allocation4], 64
    $region65: #{neural_network_forward.1} parent=1 // pred_fallthru
      _
    %2987 = vsyncpa [#allocation3], 1
    %2988 = vsyncpa [#allocation6], 1
    %2989 = vsyncpa [#allocation9], 1
    %2990 = vsyncpa [#allocation12], 1
    %2991 = vsyncpa [#allocation4], 1

</llo_original>
